<compile_context>
chip_gen: v5e
topology: v5e:2x2
jax: 0.10.0
libtpu: 0.0.40
codegen_flags: <defaults>
</compile_context>

<pallas_src>
import functools

import jax
import jax.numpy as jnp
from jax import lax
from jax.experimental import pallas as pl
from jax.experimental.pallas import tpu as pltpu

C = 64            # fixed by the module (Conv2d(64, 64, 3, padding=1))
C2 = 2 * C        # pair-packed lane width: 2 adjacent output pixels per matmul row
EPS = 1e-5        # nn.BatchNorm2d default eps
NEG_SLOPE = 0.2   # nn.LeakyReLU(negative_slope=0.2)


# --------------------------------------------------------------------------- #
# Kernels
# --------------------------------------------------------------------------- #
def _conv_band_kernel(scale_ref, shift_ref, top_ref, mid_ref, bot_ref, w_ref,
                      out_ref, stat_ref, xp_ref, col_ref, *, apply_act):
    """One row-band of a pair-packed 3x3 'SAME' convolution.

    Band activations are (N, rows, W/2, 128): lanes [0,64) = output pixel 2p,
    lanes [64,128) = output pixel 2p+1 of pair p.  xp is the bf16 padded scratch
    in the same pair layout over *padded* columns: group q = padded cols {2q,2q+1}.
    """
    n, thp2, wp2, _ = xp_ref.shape
    th, w2 = thp2 - 2, wp2 - 1
    m2 = n * th * w2                       # pair-rows in this band
    cdt = xp_ref.dtype
    i = pl.program_id(0)

    def act(v):
        # BN1-normalize + LeakyReLU fused in front of conv2; identity for conv1.
        if apply_act:
            v = v * scale_ref[...] + shift_ref[...]
            v = jnp.where(v > 0, v, NEG_SLOPE * v)
        return v.astype(cdt)

    # ---- assemble the padded bf16 scratch ----------------------------------
    # left / right image-border padding (padded col 0 and W+1), zeroed per band.
    xp_ref[:, :, 0:1, 0:C] = jnp.zeros((n, thp2, 1, C), cdt)
    xp_ref[:, :, w2:wp2, C:C2] = jnp.zeros((n, thp2, 1, C), cdt)

    def put(row0, v):
        # activation pixel 2p   -> padded col 2p+1 -> group p,   upper 64 lanes
        # activation pixel 2p+1 -> padded col 2p+2 -> group p+1, lower 64 lanes
        rows = v.shape[1]
        xp_ref[:, row0:row0 + rows, 0:w2, C:C2] = v[..., 0:C]
        xp_ref[:, row0:row0 + rows, 1:wp2, 0:C] = v[..., C:C2]

    put(0, act(top_ref[...]))              # halo row above the band
    put(1, act(mid_ref[...]))              # the band itself
    put(th + 1, act(bot_ref[...]))         # halo row below the band

    # top / bottom image border: conv padding is zero *after* the activation.
    @pl.when(i == 0)
    def _():
        xp_ref[:, 0:1, :, :] = jnp.zeros((n, 1, wp2, C2), cdt)

    @pl.when(i == pl.num_programs(0) - 1)
    def _():
        xp_ref[:, thp2 - 1:thp2, :, :] = jnp.zeros((n, 1, wp2, C2), cdt)

    # ---- im2col: six 128-wide, 128-aligned stripes, then one MXU matmul -----
    # stripe (ky, 0) = padded cols {2p, 2p+1},  stripe (ky, 1) = {2p+2, 2p+3}.
    for ky in range(3):
        col_ref[:, (2 * ky) * C2:(2 * ky + 1) * C2] = (
            xp_ref[:, ky:ky + th, 0:w2, :].reshape(m2, C2))
        col_ref[:, (2 * ky + 1) * C2:(2 * ky + 2) * C2] = (
            xp_ref[:, ky:ky + th, 1:wp2, :].reshape(m2, C2))

    acc = jnp.dot(col_ref[...], w_ref[...],
                  preferred_element_type=jnp.float32)          # (m2, 128) fp32

    out_ref[...] = acc.reshape(n, th, w2, C2)                  # raw conv output

    # per-band BatchNorm partials (sum, sum of squares); combined globally in JAX.
    s1 = jnp.sum(acc, axis=0, keepdims=True)
    s2 = jnp.sum(acc * acc, axis=0, keepdims=True)
    stat_ref[0, :, :] = jnp.concatenate([s1, s2], axis=0)
    # TODO(synk): on v7x the col buffer could be dropped in favour of six
    # MRB-accumulating (m2,128)@(128,128) dots fed directly from the bf16 scratch.


def _bn_residual_kernel(x_ref, y_ref, scale_ref, shift_ref, o_ref):
    # out = x + BN2(conv2_raw); everything lane-dense (..., 128) fp32.
    o_ref[...] = x_ref[...] + (y_ref[...] * scale_ref[...] + shift_ref[...])


# --------------------------------------------------------------------------- #
# Wrapper-side helpers
# --------------------------------------------------------------------------- #
def _pack_pair_weights(w, dtype):
    """(9, Cin, Cout) tap-major 3x3 weights -> (768, 128) block-shifted pair weights."""
    w9 = jnp.asarray(w, jnp.float32).reshape(3, 3, C, C)      # (ky, kx, cin, cout)
    wp = jnp.zeros((3, 4, C, C2), jnp.float32)
    wp = wp.at[:, 0:3, :, 0:C].set(w9)       # even output pixel: window col j = kx
    wp = wp.at[:, 1:4, :, C:C2].set(w9)      # odd output pixel:  window col j = kx+1
    return wp.reshape(12 * C, C2).astype(dtype)


def _bn_affine(stats, gamma, beta, m_total):
    """Combine per-band (sum, sumsq) partials into per-channel scale/shift (pair-dup)."""
    g = jnp.asarray(gamma, jnp.float32).reshape(-1)
    b = jnp.asarray(beta, jnp.float32).reshape(-1)
    s = jnp.sum(stats, axis=0)                         # (2, 128)
    total = s[0, :C] + s[0, C:]                        # fold even/odd pixel halves
    totsq = s[1, :C] + s[1, C:]
    mean = total / m_total
    # TODO(synk): one-pass variance (E[x^2]-E[x]^2) loses precision for very large
    # M with |mean| >> std; a Chan-style per-band combine would fix that.
    var = jnp.maximum(totsq / m_total - mean * mean, 0.0)
    scale = g * lax.rsqrt(var + EPS)
    shift = b - mean * scale
    dup = lambda v: jnp.concatenate([v, v]).reshape(1, C2)
    return dup(scale), dup(shift)


def _pick_band_rows(N, H, W2, band_rows, target_bytes=1 << 20):
    if band_rows is None:
        per_row = N * W2 * C2 * 4                      # fp32 bytes of one image row
        band_rows = max(1, min(H, target_bytes // per_row))
    band_rows = max(1, min(H, int(band_rows)))
    while H % band_rows:                               # bands must tile H exactly
        band_rows -= 1
    return band_rows


def _vmem_limit(N, TH, W2):
    band_f32 = N * TH * W2 * C2 * 4
    est = (2 * 2 * band_f32                            # band in + out, double-buffered
           + N * (TH + 2) * (W2 + 1) * C2 * 2          # padded bf16 scratch
           + N * TH * W2 * 12 * C * 2                  # im2col scratch (bf16)
           + 6 * band_f32                              # fp32 temporaries headroom
           + (2 << 20))
    # Bands are sized ~1 MiB, so this guard is far below v7x's 64 MiB physical VMEM.
    return int(min(max(est, 32 << 20), 100 << 20))


def _conv_band_call(src, w_pack, scale2, shift2, *, apply_act, N, H, W2, TH, nb,
                    matmul_dtype):
    band = pl.BlockSpec((N, TH, W2, C2), lambda i: (0, i, 0, 0))
    halo_top = pl.BlockSpec((N, 1, W2, C2),
                            lambda i: (0, jnp.maximum(i * TH - 1, 0), 0, 0))
    halo_bot = pl.BlockSpec((N, 1, W2, C2),
                            lambda i: (0, jnp.minimum((i + 1) * TH, H - 1), 0, 0))
    vec = pl.BlockSpec((1, C2), lambda i: (0, 0))
    wsp = pl.BlockSpec((12 * C, C2), lambda i: (0, 0))
    m2 = N * TH * W2
    return pl.pallas_call(
        functools.partial(_conv_band_kernel, apply_act=apply_act),
        grid=(nb,),
        in_specs=[vec, vec, halo_top, band, halo_bot, wsp],
        out_specs=(band, pl.BlockSpec((1, 2, C2), lambda i: (i, 0, 0))),
        out_shape=(jax.ShapeDtypeStruct((N, H, W2, C2), jnp.float32),
                   jax.ShapeDtypeStruct((nb, 2, C2), jnp.float32)),
        scratch_shapes=[pltpu.VMEM((N, TH + 2, W2 + 1, C2), matmul_dtype),
                        pltpu.VMEM((m2, 12 * C), matmul_dtype)],
        compiler_params=pltpu.CompilerParams(
            dimension_semantics=("parallel",),
            vmem_limit_bytes=_vmem_limit(N, TH, W2)),
    )(scale2, shift2, src, src, src, w_pack)


def _bn_residual_call(xs, y, scale2, shift2, *, N, H, W2, TH, nb):
    band = pl.BlockSpec((N, TH, W2, C2), lambda i: (0, i, 0, 0))
    vec = pl.BlockSpec((1, C2), lambda i: (0, 0))
    return pl.pallas_call(
        _bn_residual_kernel,
        grid=(nb,),
        in_specs=[band, band, vec, vec],
        out_specs=band,
        out_shape=jax.ShapeDtypeStruct((N, H, W2, C2), jnp.float32),
        compiler_params=pltpu.CompilerParams(dimension_semantics=("parallel",)),
    )(xs, y, scale2, shift2)


# --------------------------------------------------------------------------- #
# Public forward pass
# --------------------------------------------------------------------------- #
def resblock_forward(x, params, *, data_format="NCHW", band_rows=None,
                     matmul_dtype=jnp.bfloat16):
    """Forward pass of `resblock`.  x in NCHW (PyTorch layout) or NHWC."""
    w1, b1, g1, be1, w2, b2, g2, be2 = params
    del b1, b2   # exactly cancelled by training-mode BN mean subtraction.
    if data_format == "NCHW":
        xh = jnp.transpose(x, (0, 2, 3, 1))
    elif data_format == "NHWC":
        xh = x
    else:
        raise ValueError(data_format)
    xh = xh.astype(jnp.float32)
    N, H, W, Cc = xh.shape
    if Cc != C:
        raise ValueError(f"resblock is fixed at {C} channels, got {Cc}")
    if W % 2:
        # TODO(synk): odd W needs a one-column pad before pair packing.
        raise NotImplementedError("pair-packed kernel requires even W")
    W2 = W // 2
    M = N * H * W
    TH = _pick_band_rows(N, H, W2, band_rows)
    nb = H // TH

    xs = xh.reshape(N, H, W2, C2)                 # lane-dense pair layout (free view)
    w1p = _pack_pair_weights(w1, matmul_dtype)
    w2p = _pack_pair_weights(w2, matmul_dtype)
    one = jnp.ones((1, C2), jnp.float32)
    zero = jnp.zeros((1, C2), jnp.float32)

    conv = functools.partial(_conv_band_call, N=N, H=H, W2=W2, TH=TH, nb=nb,
                             matmul_dtype=matmul_dtype)
    y1, st1 = conv(xs, w1p, one, zero, apply_act=False)      # conv1, raw output
    sc1, sh1 = _bn_affine(st1, g1, be1, M)                   # BN1 global combine
    y2, st2 = conv(y1, w2p, sc1, sh1, apply_act=True)        # BN1+Leaky fused + conv2
    sc2, sh2 = _bn_affine(st2, g2, be2, M)                   # BN2 global combine
    out = _bn_residual_call(xs, y2, sc2, sh2, N=N, H=H, W2=W2, TH=TH, nb=nb)

    out = out.reshape(N, H, W, Cc)
    if data_format == "NCHW":
        out = jnp.transpose(out, (0, 3, 1, 2))
    return out
    # TODO(synk): BatchNorm running_mean / running_var buffer updates (training-time
    # side effects) are not reproduced; they do not affect the returned output.


# --------------------------------------------------------------------------- #
# Pure-JAX reference (for validation)
# --------------------------------------------------------------------------- #
def resblock_ref(x_nchw, params, cast_dtype=None):
    """cast_dtype=None reproduces the fp32 module exactly; cast_dtype=jnp.bfloat16
    mirrors the kernel's bf16-operand / fp32-accumulation matmuls."""
    w1, b1, g1, be1, w2, b2, g2, be2 = params
    x = jnp.transpose(x_nchw, (0, 2, 3, 1)).astype(jnp.float32)

    def conv(h, w, b):
        w_hwio = jnp.asarray(w, jnp.float32).reshape(3, 3, C, C)
        if cast_dtype is not None:
            h = h.astype(cast_dtype)
            w_hwio = w_hwio.astype(cast_dtype)
        out = lax.conv_general_dilated(
            h, w_hwio, (1, 1), "SAME",
            dimension_numbers=("NHWC", "HWIO", "NHWC"),
            preferred_element_type=jnp.float32)
        return out + jnp.asarray(b, jnp.float32).reshape(1, 1, 1, C)

    def bn(h, g, be):
        m = jnp.mean(h, axis=(0, 1, 2), keepdims=True)
        v = jnp.mean((h - m) ** 2, axis=(0, 1, 2), keepdims=True)
        return ((h - m) * lax.rsqrt(v + EPS) * jnp.asarray(g).reshape(1, 1, 1, C)
                + jnp.asarray(be).reshape(1, 1, 1, C))

    h = bn(conv(x, w1, b1), g1, be1)
    h = jnp.where(h > 0, h, NEG_SLOPE * h)
    h = bn(conv(h, w2, b2), g2, be2)
    return jnp.transpose(x + h, (0, 3, 1, 2))


if __name__ == "__main__":
    key = jax.random.PRNGKey(0)
    k = jax.random.split(key, 5)
    N, Hs, Ws = 2, 16, 16
    x = jax.random.normal(k[0], (N, C, Hs, Ws), jnp.float32)     # NCHW, like PyTorch

    # Deterministic synthetic parameters (shapes implied by the module __init__):
    # conv weights (tap-major 3x3, Cin, Cout), biases; BN gamma=1 / beta=0 defaults.
    w1 = jax.random.normal(k[1], (9, C, C), jnp.float32) * 0.05
    b1 = jax.random.normal(k[2], (1, C), jnp.float32) * 0.05
    w2 = jax.random.normal(k[3], (9, C, C), jnp.float32) * 0.05
    b2 = jax.random.normal(k[4], (1, C), jnp.float32) * 0.05
    g1 = jnp.ones((1, C), jnp.float32)
    be1 = jnp.zeros((1, C), jnp.float32)
    g2 = jnp.ones((1, C), jnp.float32)
    be2 = jnp.zeros((1, C), jnp.float32)
    params = (w1, b1, g1, be1, w2, b2, g2, be2)

    # Tiled path: 4 row-bands of 4 rows (exercises halos + the parallel grid axis).
    out = jax.block_until_ready(resblock_forward(x, params, band_rows=4))
    assert out.shape == x.shape

    # Tight check vs. a reference using the same bf16 operands / fp32 accumulation.
    ref_bf16 = jax.block_until_ready(resblock_ref(x, params, cast_dtype=jnp.bfloat16))
    err = float(jnp.max(jnp.abs(out - ref_bf16)))
    assert jnp.allclose(out, ref_bf16, atol=2e-3, rtol=2e-3), err

    # Fidelity vs. the full-fp32 module semantics (difference = bf16 rounding only).
    ref_f32 = jax.block_until_ready(resblock_ref(x, params))
    err32 = float(jnp.max(jnp.abs(out - ref_f32)))
    assert jnp.allclose(out, ref_f32, atol=5e-2, rtol=5e-2), err32

    # Single-band path (default heuristic picks one band at this size).
    out1 = jax.block_until_ready(resblock_forward(x, params))
    err1 = float(jnp.max(jnp.abs(out1 - ref_bf16)))
    assert jnp.allclose(out1, ref_bf16, atol=2e-3, rtol=2e-3), err1

    print("KERNEL_OK")
</pallas_src>

<mosaic_0001>
module attributes {stable_mosaic.version = 11 : i64} {
  func.func @_conv_band_kernel(%arg0: i32, %arg1: memref<1x128xf32, #tpu.memory_space<vmem>>, %arg2: memref<1x128xf32, #tpu.memory_space<vmem>>, %arg3: memref<2x1x8x128xf32, #tpu.memory_space<vmem>>, %arg4: memref<2x4x8x128xf32, #tpu.memory_space<vmem>>, %arg5: memref<2x1x8x128xf32, #tpu.memory_space<vmem>>, %arg6: memref<768x128xbf16, #tpu.memory_space<vmem>>, %arg7: memref<2x4x8x128xf32, #tpu.memory_space<vmem>>, %arg8: memref<1x2x128xf32, #tpu.memory_space<vmem>>, %arg9: memref<2x6x9x128xbf16, #tpu.memory_space<vmem>>, %arg10: memref<64x768xbf16, #tpu.memory_space<vmem>>) attributes {dimension_semantics = [#tpu.dimension_semantics<parallel>], iteration_bounds = array<i64: 4>, scalar_prefetch = 0 : i64, scratch_operands = 2 : i64, tpu.core_type = #tpu.core_type<tc>, window_params = [{pipeline_mode = #tpu.pipeline_mode<synchronous>, transform_indices = @transform_0, window_bounds = array<i64: 1, 128>}, {pipeline_mode = #tpu.pipeline_mode<synchronous>, transform_indices = @transform_1, window_bounds = array<i64: 1, 128>}, {transform_indices = @transform_2, window_bounds = array<i64: 2, 1, 8, 128>}, {transform_indices = @transform_3, window_bounds = array<i64: 2, 4, 8, 128>}, {transform_indices = @transform_4, window_bounds = array<i64: 2, 1, 8, 128>}, {pipeline_mode = #tpu.pipeline_mode<synchronous>, transform_indices = @transform_5, window_bounds = array<i64: 768, 128>}, {transform_indices = @transform_6, window_bounds = array<i64: 2, 4, 8, 128>}, {transform_indices = @transform_7, window_bounds = array<i64: 1, 2, 128>}]} {
    %cst = arith.constant 0.000000e+00 : bf16
    %0 = vector.broadcast %cst : bf16 to vector<2x6x1x64xbf16>
    %c0 = arith.constant 0 : index
    %c0_0 = arith.constant 0 : index
    %c0_1 = arith.constant 0 : index
    %c0_2 = arith.constant 0 : index
    %1 = vector.load %arg9[%c0, %c0_0, %c0_1, %c0_2] : memref<2x6x9x128xbf16, #tpu.memory_space<vmem>>, vector<2x6x1x64xbf16>
    tpu.vector_store %arg9[%c0, %c0_0, %c0_1, %c0_2], %0 {strides = array<i32>} : memref<2x6x9x128xbf16, #tpu.memory_space<vmem>>, vector<2x6x1x64xbf16>,
    %cst_3 = arith.constant 0.000000e+00 : bf16
    %2 = vector.broadcast %cst_3 : bf16 to vector<2x6x1x64xbf16>
    %c0_4 = arith.constant 0 : index
    %c0_5 = arith.constant 0 : index
    %c8 = arith.constant 8 : index
    %c64 = arith.constant 64 : index
    %3 = vector.load %arg9[%c0_4, %c0_5, %c8, %c64] : memref<2x6x9x128xbf16, #tpu.memory_space<vmem>>, vector<2x6x1x64xbf16>
    tpu.vector_store %arg9[%c0_4, %c0_5, %c8, %c64], %2 {strides = array<i32>} : memref<2x6x9x128xbf16, #tpu.memory_space<vmem>>, vector<2x6x1x64xbf16>,
    %c0_6 = arith.constant 0 : index
    %c0_7 = arith.constant 0 : index
    %c0_8 = arith.constant 0 : index
    %c0_9 = arith.constant 0 : index
    %4 = vector.load %arg3[%c0_6, %c0_7, %c0_8, %c0_9] : memref<2x1x8x128xf32, #tpu.memory_space<vmem>>, vector<2x1x8x128xf32>
    %5 = arith.truncf %4 : vector<2x1x8x128xf32> to vector<2x1x8x128xbf16>
    %6 = vector.extract_strided_slice %5 {offsets = [0, 0, 0, 0], sizes = [2, 1, 8, 64], strides = [1, 1, 1, 1]} : vector<2x1x8x128xbf16> to vector<2x1x8x64xbf16>
    %c0_10 = arith.constant 0 : index
    %c0_11 = arith.constant 0 : index
    %c0_12 = arith.constant 0 : index
    %c64_13 = arith.constant 64 : index
    %7 = vector.load %arg9[%c0_10, %c0_11, %c0_12, %c64_13] : memref<2x6x9x128xbf16, #tpu.memory_space<vmem>>, vector<2x1x8x64xbf16>
    tpu.vector_store %arg9[%c0_10, %c0_11, %c0_12, %c64_13], %6 {strides = array<i32>} : memref<2x6x9x128xbf16, #tpu.memory_space<vmem>>, vector<2x1x8x64xbf16>,
    %8 = vector.extract_strided_slice %5 {offsets = [0, 0, 0, 64], sizes = [2, 1, 8, 64], strides = [1, 1, 1, 1]} : vector<2x1x8x128xbf16> to vector<2x1x8x64xbf16>
    %c0_14 = arith.constant 0 : index
    %c0_15 = arith.constant 0 : index
    %c1 = arith.constant 1 : index
    %c0_16 = arith.constant 0 : index
    %9 = vector.load %arg9[%c0_14, %c0_15, %c1, %c0_16] : memref<2x6x9x128xbf16, #tpu.memory_space<vmem>>, vector<2x1x8x64xbf16>
    tpu.vector_store %arg9[%c0_14, %c0_15, %c1, %c0_16], %8 {strides = array<i32>} : memref<2x6x9x128xbf16, #tpu.memory_space<vmem>>, vector<2x1x8x64xbf16>,
    %c0_17 = arith.constant 0 : index
    %c0_18 = arith.constant 0 : index
    %c0_19 = arith.constant 0 : index
    %c0_20 = arith.constant 0 : index
    %10 = vector.load %arg4[%c0_17, %c0_18, %c0_19, %c0_20] : memref<2x4x8x128xf32, #tpu.memory_space<vmem>>, vector<2x4x8x128xf32>
    %11 = arith.truncf %10 : vector<2x4x8x128xf32> to vector<2x4x8x128xbf16>
    %12 = vector.extract_strided_slice %11 {offsets = [0, 0, 0, 0], sizes = [2, 4, 8, 64], strides = [1, 1, 1, 1]} : vector<2x4x8x128xbf16> to vector<2x4x8x64xbf16>
    %c0_21 = arith.constant 0 : index
    %c1_22 = arith.constant 1 : index
    %c0_23 = arith.constant 0 : index
    %c64_24 = arith.constant 64 : index
    %13 = vector.load %arg9[%c0_21, %c1_22, %c0_23, %c64_24] : memref<2x6x9x128xbf16, #tpu.memory_space<vmem>>, vector<2x4x8x64xbf16>
    tpu.vector_store %arg9[%c0_21, %c1_22, %c0_23, %c64_24], %12 {strides = array<i32>} : memref<2x6x9x128xbf16, #tpu.memory_space<vmem>>, vector<2x4x8x64xbf16>,
    %14 = vector.extract_strided_slice %11 {offsets = [0, 0, 0, 64], sizes = [2, 4, 8, 64], strides = [1, 1, 1, 1]} : vector<2x4x8x128xbf16> to vector<2x4x8x64xbf16>
    %c0_25 = arith.constant 0 : index
    %c1_26 = arith.constant 1 : index
    %c1_27 = arith.constant 1 : index
    %c0_28 = arith.constant 0 : index
    %15 = vector.load %arg9[%c0_25, %c1_26, %c1_27, %c0_28] : memref<2x6x9x128xbf16, #tpu.memory_space<vmem>>, vector<2x4x8x64xbf16>
    tpu.vector_store %arg9[%c0_25, %c1_26, %c1_27, %c0_28], %14 {strides = array<i32>} : memref<2x6x9x128xbf16, #tpu.memory_space<vmem>>, vector<2x4x8x64xbf16>,
    %c0_29 = arith.constant 0 : index
    %c0_30 = arith.constant 0 : index
    %c0_31 = arith.constant 0 : index
    %c0_32 = arith.constant 0 : index
    %16 = vector.load %arg5[%c0_29, %c0_30, %c0_31, %c0_32] : memref<2x1x8x128xf32, #tpu.memory_space<vmem>>, vector<2x1x8x128xf32>
    %17 = arith.truncf %16 : vector<2x1x8x128xf32> to vector<2x1x8x128xbf16>
    %18 = vector.extract_strided_slice %17 {offsets = [0, 0, 0, 0], sizes = [2, 1, 8, 64], strides = [1, 1, 1, 1]} : vector<2x1x8x128xbf16> to vector<2x1x8x64xbf16>
    %c0_33 = arith.constant 0 : index
    %c5 = arith.constant 5 : index
    %c0_34 = arith.constant 0 : index
    %c64_35 = arith.constant 64 : index
    %19 = vector.load %arg9[%c0_33, %c5, %c0_34, %c64_35] : memref<2x6x9x128xbf16, #tpu.memory_space<vmem>>, vector<2x1x8x64xbf16>
    tpu.vector_store %arg9[%c0_33, %c5, %c0_34, %c64_35], %18 {strides = array<i32>} : memref<2x6x9x128xbf16, #tpu.memory_space<vmem>>, vector<2x1x8x64xbf16>,
    %20 = vector.extract_strided_slice %17 {offsets = [0, 0, 0, 64], sizes = [2, 1, 8, 64], strides = [1, 1, 1, 1]} : vector<2x1x8x128xbf16> to vector<2x1x8x64xbf16>
    %c0_36 = arith.constant 0 : index
    %c5_37 = arith.constant 5 : index
    %c1_38 = arith.constant 1 : index
    %c0_39 = arith.constant 0 : index
    %21 = vector.load %arg9[%c0_36, %c5_37, %c1_38, %c0_39] : memref<2x6x9x128xbf16, #tpu.memory_space<vmem>>, vector<2x1x8x64xbf16>
    tpu.vector_store %arg9[%c0_36, %c5_37, %c1_38, %c0_39], %20 {strides = array<i32>} : memref<2x6x9x128xbf16, #tpu.memory_space<vmem>>, vector<2x1x8x64xbf16>,
    %c0_i32 = arith.constant 0 : i32
    %22 = arith.cmpi eq, %arg0, %c0_i32 : i32
    %23 = arith.extui %22 : i1 to i32
    %c0_i32_40 = arith.constant 0 : i32
    %24 = arith.cmpi ne, %23, %c0_i32_40 : i32
    scf.if %24 {
      %cst_86 = arith.constant 0.000000e+00 : bf16
      %60 = vector.broadcast %cst_86 : bf16 to vector<2x1x9x128xbf16>
      %c0_87 = arith.constant 0 : index
      %c0_88 = arith.constant 0 : index
      %c0_89 = arith.constant 0 : index
      %c0_90 = arith.constant 0 : index
      %61 = vector.load %arg9[%c0_87, %c0_88, %c0_89, %c0_90] : memref<2x6x9x128xbf16, #tpu.memory_space<vmem>>, vector<2x1x9x128xbf16>
      tpu.vector_store %arg9[%c0_87, %c0_88, %c0_89, %c0_90], %60 {strides = array<i32>} : memref<2x6x9x128xbf16, #tpu.memory_space<vmem>>, vector<2x1x9x128xbf16>,
    } else {
    }
    %c3_i32 = arith.constant 3 : i32
    %25 = arith.cmpi eq, %arg0, %c3_i32 : i32
    %26 = arith.extui %25 : i1 to i32
    %c0_i32_41 = arith.constant 0 : i32
    %27 = arith.cmpi ne, %26, %c0_i32_41 : i32
    scf.if %27 {
      %cst_86 = arith.constant 0.000000e+00 : bf16
      %60 = vector.broadcast %cst_86 : bf16 to vector<2x1x9x128xbf16>
      %c0_87 = arith.constant 0 : index
      %c5_88 = arith.constant 5 : index
      %c0_89 = arith.constant 0 : index
      %c0_90 = arith.constant 0 : index
      %61 = vector.load %arg9[%c0_87, %c5_88, %c0_89, %c0_90] : memref<2x6x9x128xbf16, #tpu.memory_space<vmem>>, vector<2x1x9x128xbf16>
      tpu.vector_store %arg9[%c0_87, %c5_88, %c0_89, %c0_90], %60 {strides = array<i32>} : memref<2x6x9x128xbf16, #tpu.memory_space<vmem>>, vector<2x1x9x128xbf16>,
    } else {
    }
    %c0_42 = arith.constant 0 : index
    %c0_43 = arith.constant 0 : index
    %c0_44 = arith.constant 0 : index
    %c0_45 = arith.constant 0 : index
    %28 = vector.load %arg9[%c0_42, %c0_43, %c0_44, %c0_45] : memref<2x6x9x128xbf16, #tpu.memory_space<vmem>>, vector<2x4x8x128xbf16>
    %29 = vector.shape_cast %28 : vector<2x4x8x128xbf16> to vector<64x128xbf16>
    %c0_46 = arith.constant 0 : index
    %c0_47 = arith.constant 0 : index
    %30 = vector.load %arg10[%c0_46, %c0_47] : memref<64x768xbf16, #tpu.memory_space<vmem>>, vector<64x128xbf16>
    tpu.vector_store %arg10[%c0_46, %c0_47], %29 {strides = array<i32>} : memref<64x768xbf16, #tpu.memory_space<vmem>>, vector<64x128xbf16>,
    %c0_48 = arith.constant 0 : index
    %c0_49 = arith.constant 0 : index
    %c1_50 = arith.constant 1 : index
    %c0_51 = arith.constant 0 : index
    %31 = vector.load %arg9[%c0_48, %c0_49, %c1_50, %c0_51] : memref<2x6x9x128xbf16, #tpu.memory_space<vmem>>, vector<2x4x8x128xbf16>
    %32 = vector.shape_cast %31 : vector<2x4x8x128xbf16> to vector<64x128xbf16>
    %c0_52 = arith.constant 0 : index
    %c128 = arith.constant 128 : index
    %33 = vector.load %arg10[%c0_52, %c128] : memref<64x768xbf16, #tpu.memory_space<vmem>>, vector<64x128xbf16>
    tpu.vector_store %arg10[%c0_52, %c128], %32 {strides = array<i32>} : memref<64x768xbf16, #tpu.memory_space<vmem>>, vector<64x128xbf16>,
    %c0_53 = arith.constant 0 : index
    %c1_54 = arith.constant 1 : index
    %c0_55 = arith.constant 0 : index
    %c0_56 = arith.constant 0 : index
    %34 = vector.load %arg9[%c0_53, %c1_54, %c0_55, %c0_56] : memref<2x6x9x128xbf16, #tpu.memory_space<vmem>>, vector<2x4x8x128xbf16>
    %35 = vector.shape_cast %34 : vector<2x4x8x128xbf16> to vector<64x128xbf16>
    %c0_57 = arith.constant 0 : index
    %c256 = arith.constant 256 : index
    %36 = vector.load %arg10[%c0_57, %c256] : memref<64x768xbf16, #tpu.memory_space<vmem>>, vector<64x128xbf16>
    tpu.vector_store %arg10[%c0_57, %c256], %35 {strides = array<i32>} : memref<64x768xbf16, #tpu.memory_space<vmem>>, vector<64x128xbf16>,
    %c0_58 = arith.constant 0 : index
    %c1_59 = arith.constant 1 : index
    %c1_60 = arith.constant 1 : index
    %c0_61 = arith.constant 0 : index
    %37 = vector.load %arg9[%c0_58, %c1_59, %c1_60, %c0_61] : memref<2x6x9x128xbf16, #tpu.memory_space<vmem>>, vector<2x4x8x128xbf16>
    %38 = vector.shape_cast %37 : vector<2x4x8x128xbf16> to vector<64x128xbf16>
    %c0_62 = arith.constant 0 : index
    %c384 = arith.constant 384 : index
    %39 = vector.load %arg10[%c0_62, %c384] : memref<64x768xbf16, #tpu.memory_space<vmem>>, vector<64x128xbf16>
    tpu.vector_store %arg10[%c0_62, %c384], %38 {strides = array<i32>} : memref<64x768xbf16, #tpu.memory_space<vmem>>, vector<64x128xbf16>,
    %c0_63 = arith.constant 0 : index
    %c2 = arith.constant 2 : index
    %c0_64 = arith.constant 0 : index
    %c0_65 = arith.constant 0 : index
    %40 = vector.load %arg9[%c0_63, %c2, %c0_64, %c0_65] : memref<2x6x9x128xbf16, #tpu.memory_space<vmem>>, vector<2x4x8x128xbf16>
    %41 = vector.shape_cast %40 : vector<2x4x8x128xbf16> to vector<64x128xbf16>
    %c0_66 = arith.constant 0 : index
    %c512 = arith.constant 512 : index
    %42 = vector.load %arg10[%c0_66, %c512] : memref<64x768xbf16, #tpu.memory_space<vmem>>, vector<64x128xbf16>
    tpu.vector_store %arg10[%c0_66, %c512], %41 {strides = array<i32>} : memref<64x768xbf16, #tpu.memory_space<vmem>>, vector<64x128xbf16>,
    %c0_67 = arith.constant 0 : index
    %c2_68 = arith.constant 2 : index
    %c1_69 = arith.constant 1 : index
    %c0_70 = arith.constant 0 : index
    %43 = vector.load %arg9[%c0_67, %c2_68, %c1_69, %c0_70] : memref<2x6x9x128xbf16, #tpu.memory_space<vmem>>, vector<2x4x8x128xbf16>
    %44 = vector.shape_cast %43 : vector<2x4x8x128xbf16> to vector<64x128xbf16>
    %c0_71 = arith.constant 0 : index
    %c640 = arith.constant 640 : index
    %45 = vector.load %arg10[%c0_71, %c640] : memref<64x768xbf16, #tpu.memory_space<vmem>>, vector<64x128xbf16>
    tpu.vector_store %arg10[%c0_71, %c640], %44 {strides = array<i32>} : memref<64x768xbf16, #tpu.memory_space<vmem>>, vector<64x128xbf16>,
    %c0_72 = arith.constant 0 : index
    %c0_73 = arith.constant 0 : index
    %46 = vector.load %arg10[%c0_72, %c0_73] : memref<64x768xbf16, #tpu.memory_space<vmem>>, vector<64x768xbf16>
    %c0_74 = arith.constant 0 : index
    %c0_75 = arith.constant 0 : index
    %47 = vector.load %arg6[%c0_74, %c0_75] : memref<768x128xbf16, #tpu.memory_space<vmem>>, vector<768x128xbf16>
    %cst_76 = arith.constant dense<0.000000e+00> : vector<64x128xf32>
    %48 = tpu.matmul %46, %47, %cst_76 {dimension_numbers = #tpu.dot_dimension_numbers<[1], [0], [0], [1], [0, 0, 1, 1], [], []>} : vector<64x768xbf16>, vector<768x128xbf16>, vector<64x128xf32> -> vector<64x128xf32>
    %49 = vector.shape_cast %48 : vector<64x128xf32> to vector<2x4x8x128xf32>
    %c0_77 = arith.constant 0 : index
    %c0_78 = arith.constant 0 : index
    %c0_79 = arith.constant 0 : index
    %c0_80 = arith.constant 0 : index
    %50 = vector.load %arg7[%c0_77, %c0_78, %c0_79, %c0_80] : memref<2x4x8x128xf32, #tpu.memory_space<vmem>>, vector<2x4x8x128xf32>
    tpu.vector_store %arg7[%c0_77, %c0_78, %c0_79, %c0_80], %49 {strides = array<i32>} : memref<2x4x8x128xf32, #tpu.memory_space<vmem>>, vector<2x4x8x128xf32>,
    %cst_81 = arith.constant dense<0.000000e+00> : vector<128xf32>
    %51 = vector.multi_reduction <add>, %48, %cst_81 [0] : vector<64x128xf32> to vector<128xf32>
    %52 = vector.shape_cast %51 : vector<128xf32> to vector<1x128xf32>
    %53 = arith.mulf %48, %48 : vector<64x128xf32>
    %cst_82 = arith.constant dense<0.000000e+00> : vector<128xf32>
    %54 = vector.multi_reduction <add>, %53, %cst_82 [0] : vector<64x128xf32> to vector<128xf32>
    %55 = vector.shape_cast %54 : vector<128xf32> to vector<1x128xf32>
    %56 = tpu.concatenate %52, %55 in 0 : vector<1x128xf32>, vector<1x128xf32> -> vector<2x128xf32>
    %c0_83 = arith.constant 0 : index
    %c0_84 = arith.constant 0 : index
    %c0_85 = arith.constant 0 : index
    %57 = vector.load %arg8[%c0_83, %c0_84, %c0_85] : memref<1x2x128xf32, #tpu.memory_space<vmem>>, vector<1x2x128xf32>
    %58 = vector.shape_cast %57 : vector<1x2x128xf32> to vector<2x128xf32>
    %59 = vector.shape_cast %56 : vector<2x128xf32> to vector<1x2x128xf32>
    tpu.vector_store %arg8[%c0_83, %c0_84, %c0_85], %59 {strides = array<i32>} : memref<1x2x128xf32, #tpu.memory_space<vmem>>, vector<1x2x128xf32>,
    return
  }
  func.func @transform_0(%arg0: i32) -> (i32, i32) {
    %c0_i32 = arith.constant 0 : i32
    %c0_i32_0 = arith.constant 0 : i32
    %c0_i32_1 = arith.constant 0 : i32
    return %c0_i32, %c0_i32_0 : i32, i32
  }
  func.func @transform_1(%arg0: i32) -> (i32, i32) {
    %c0_i32 = arith.constant 0 : i32
    %c0_i32_0 = arith.constant 0 : i32
    %c0_i32_1 = arith.constant 0 : i32
    return %c0_i32, %c0_i32_0 : i32, i32
  }
  func.func @transform_2(%arg0: i32) -> (i32, i32, i32, i32) {
    %c4_i32 = arith.constant 4 : i32
    %0 = arith.muli %arg0, %c4_i32 : i32
    %c1_i32 = arith.constant 1 : i32
    %1 = arith.subi %0, %c1_i32 : i32
    %c0_i32 = arith.constant 0 : i32
    %2 = arith.maxsi %1, %c0_i32 : i32
    %c0_i32_0 = arith.constant 0 : i32
    %c0_i32_1 = arith.constant 0 : i32
    %c0_i32_2 = arith.constant 0 : i32
    %c0_i32_3 = arith.constant 0 : i32
    return %c0_i32_0, %2, %c0_i32_1, %c0_i32_2 : i32, i32, i32, i32
  }
  func.func @transform_3(%arg0: i32) -> (i32, i32, i32, i32) {
    %c0_i32 = arith.constant 0 : i32
    %c0_i32_0 = arith.constant 0 : i32
    %c0_i32_1 = arith.constant 0 : i32
    %c0_i32_2 = arith.constant 0 : i32
    return %c0_i32, %arg0, %c0_i32_0, %c0_i32_1 : i32, i32, i32, i32
  }
  func.func @transform_4(%arg0: i32) -> (i32, i32, i32, i32) {
    %c1_i32 = arith.constant 1 : i32
    %0 = arith.addi %arg0, %c1_i32 : i32
    %c4_i32 = arith.constant 4 : i32
    %1 = arith.muli %0, %c4_i32 : i32
    %c15_i32 = arith.constant 15 : i32
    %2 = arith.minsi %1, %c15_i32 : i32
    %c0_i32 = arith.constant 0 : i32
    %c0_i32_0 = arith.constant 0 : i32
    %c0_i32_1 = arith.constant 0 : i32
    %c0_i32_2 = arith.constant 0 : i32
    return %c0_i32, %2, %c0_i32_0, %c0_i32_1 : i32, i32, i32, i32
  }
  func.func @transform_5(%arg0: i32) -> (i32, i32) {
    %c0_i32 = arith.constant 0 : i32
    %c0_i32_0 = arith.constant 0 : i32
    %c0_i32_1 = arith.constant 0 : i32
    return %c0_i32, %c0_i32_0 : i32, i32
  }
  func.func @transform_6(%arg0: i32) -> (i32, i32, i32, i32) {
    %c0_i32 = arith.constant 0 : i32
    %c0_i32_0 = arith.constant 0 : i32
    %c0_i32_1 = arith.constant 0 : i32
    %c0_i32_2 = arith.constant 0 : i32
    return %c0_i32, %arg0, %c0_i32_0, %c0_i32_1 : i32, i32, i32, i32
  }
  func.func @transform_7(%arg0: i32) -> (i32, i32, i32) {
    %c0_i32 = arith.constant 0 : i32
    %c0_i32_0 = arith.constant 0 : i32
    %c0_i32_1 = arith.constant 0 : i32
    return %arg0, %c0_i32, %c0_i32_0 : i32, i32, i32
  }
}

</mosaic_0001>

<llo_original>
// kernel: tpu_custom_call.1
$region0: #{tpu_custom_call.1}
  #allocation0 [shape = 'u32[]', space=smem, size = 0x4, offset = 0x4, fixed_abs, tag = 'smem constant byte address 0x4 - core index']
  #allocation1 [shape = 'u32[72,128]{1,0:T(1,128)}', space=vmem, size = 0x9000, scoped, tag = 'internal scratch']
  #allocation2 [shape = 'bf16[2,6,9,128]{3,2,1,0:T(8,128)(2,1)}', space=vmem, size = 0xc000, scoped, tag = 'scratch operand']
  #allocation3 [shape = 'bf16[64,768]{1,0:T(8,128)(2,1)}', space=vmem, size = 0x18000, scoped, tag = 'scratch operand']
  #allocation16 [shape = 's32[]', space=sflag, size = 0x4, offset = 0, fixed_abs, tag = 'sflag constant byte address 0x0 - dummy sync flag']
  #allocation18 [shape = 's32[]', space=sflag, size = 0x4, offset = 0, fixed_abs, tag = 'sflag constant byte address 0x0 - dummy sync flag']
  %s0 = inlined_call_operand.hbm [shape: f32[1,128], index: 0, kind: input, shape index: {}]
  %s1 = inlined_call_operand.hbm [shape: f32[1,128], index: 1, kind: input, shape index: {}]
  %s2 = inlined_call_operand.hbm [shape: f32[2,16,8,128], index: 2, kind: input, shape index: {}]
  %s3 = inlined_call_operand.hbm [shape: f32[2,16,8,128], index: 3, kind: input, shape index: {}]
  %s4 = inlined_call_operand.hbm [shape: f32[2,16,8,128], index: 4, kind: input, shape index: {}]
  %s5 = inlined_call_operand.hbm [shape: bf16[768,128], index: 5, kind: input, shape index: {}]
  %s6 = inlined_call_operand.hbm [shape: f32[2,16,8,128], index: 6, kind: output, shape index: {0}]
  %s7 = inlined_call_operand.hbm [shape: f32[4,2,128], index: 7, kind: output, shape index: {1}]
  %8 = xla_tuple %s6, %s7
  %s9 = sld [smem:[#allocation0]]
  $region97: #{tpu_custom_call.1} parent=0
    _
  %s11 = ssub.s32 1, %s9
  %s12 = scalar_select 0, %s11, %s9
  $region1: #{tpu_custom_call.1} parent=0
    #allocation4 [shape = 'u8[512]{0}', space=vmem, size = 0x400, scoped, tag = 'input window, operand 0, single buffered']
    #allocation5 [shape = 's32[2]{0}', space=sflag, size = 0x8, scoped, tag = 'scoped memory for tpu_custom_call.1']
    #allocation6 [shape = 's32[2]{0}', space=sflag, size = 0x8, scoped, tag = 'scoped memory for tpu_custom_call.1']
    #allocation7 [shape = 'u8[512]{0}', space=vmem, size = 0x400, scoped, tag = 'input window, operand 1, single buffered']
    #allocation8 [shape = 's32[1]{0}', space=sflag, size = 0x4, scoped, tag = 'scoped memory for tpu_custom_call.1']
    #allocation9 [shape = 'u8[16384]{0}', space=vmem, size = 0x4000, scoped, tag = 'input window, operand 2']
    #allocation10 [shape = 'u8[65536]{0}', space=vmem, size = 0x10000, scoped, tag = 'input window, operand 3']
    #allocation11 [shape = 'u8[16384]{0}', space=vmem, size = 0x4000, scoped, tag = 'input window, operand 4']
    #allocation12 [shape = 'u8[196608]{0}', space=vmem, size = 0x30000, scoped, tag = 'input window, operand 5, single buffered']
    #allocation13 [shape = 'u8[65536]{0}', space=vmem, size = 0x10000, scoped, tag = 'output window, operand 0']
    #allocation14 [shape = 'u8[2048]{0}', space=vmem, size = 0x800, scoped, tag = 'output window, operand 1']
    #allocation15 [shape = 's32[2]{0}', space=sflag, size = 0x8, scoped, tag = 'scoped memory for tpu_custom_call.1']
    %13 = vsyncpa [#allocation5], 0
    %14 = vsyncpa [#allocation8], 0
    %15 = vsyncpa [#allocation6], 0
    %s16 = scalar_lea.sflag [#allocation6], 1
    %17 = vsyncpa %s16, 0
    %18 = vsyncpa [#allocation15], 0
    %s19 = scalar_lea.sflag [#allocation15], 1
    %20 = vsyncpa %s19, 0
    loop: start=0, step=1, limit=6
    $region2: #{tpu_custom_call.1} parent=1 // loop_pre_header
      _
    $region3: #{tpu_custom_call.1} parent=1 // loop_header
      %s22 = sphi 0, %s26
      %p23 = scmp.ge.s32.totalorder %s22, 6
      %s30 = sphi 0, %s30
      %s32 = sphi 0, %s30
      %s33 = sphi 0, %s32
      %s47 = sphi 0, %s33
      %s51 = sphi 0, %s51
      %s53 = sphi 0, %s51
      %s54 = sphi 0, %s53
      %s68 = sphi 0, %s54
      %s82 = sphi 0, %s84
      %s85 = sphi 0, %s82
      %s86 = sphi 0, %s85
      %s102 = sphi 0, %s86
      %s108 = sphi 0, %s110
      %s111 = sphi 0, %s108
      %s112 = sphi 0, %s111
      %s128 = sphi 0, %s112
      %s142 = sphi 0, %s144
      %s145 = sphi 0, %s142
      %s146 = sphi 0, %s145
      %s162 = sphi 0, %s146
      %s166 = sphi 0, %s166
      %s168 = sphi 0, %s166
      %s169 = sphi 0, %s168
      %s183 = sphi 0, %s169
      %s189 = sphi 0, %s191
      %s192 = sphi 0, %s189
      %s193 = sphi 0, %s192
      %s209 = sphi 0, %s193
      %s215 = sphi 0, %s217
      %s218 = sphi 0, %s215
      %s219 = sphi 0, %s218
      %s235 = sphi 0, %s219
    $region4: #{tpu_custom_call.1} parent=1 // loop_header_branch
      %25 = sbr.rel (%p23) target = $region8
    $region5: #{tpu_custom_call.1} parent=1 // loop_body
      %s27 = ssub.s32 %s22, 1
      %s28 = ssub.s32 %s22, 2
      %s29 = sadd.s32 %s22, 1
      %s31 = sadd.s32 %s30, 1
      %p34 = scmp.eq.s32.totalorder %s22, 3
      %p35 = scmp.ne.s32.totalorder %s30, %s32
      %p36 = scmp.eq.s32.totalorder %s22, 0
      %p37 = por %p35, %p36
      %p38 = scmp.ne.s32.totalorder %s30, %s32
      %p39 = scmp.eq.s32.totalorder %s27, 3
      %p40 = por %p38, %p39
      %p41 = scmp.ne.s32.totalorder %s32, %s33
      %p42 = scmp.eq.s32.totalorder %s27, 0
      %p43 = por %p41, %p42
      %p44 = scmp.ne.s32.totalorder %s32, %s33
      %p45 = scmp.eq.s32.totalorder %s28, 3
      %p46 = por %p44, %p45
      %p48 = scmp.ne.s32.totalorder %s33, %s47
      %p49 = scmp.eq.s32.totalorder %s28, 0
      %p50 = por %p48, %p49
      %s52 = sadd.s32 %s51, 1
      %p55 = scmp.eq.s32.totalorder %s22, 3
      %p56 = scmp.ne.s32.totalorder %s51, %s53
      %p57 = scmp.eq.s32.totalorder %s22, 0
      %p58 = por %p56, %p57
      %p59 = scmp.ne.s32.totalorder %s51, %s53
      %p60 = scmp.eq.s32.totalorder %s27, 3
      %p61 = por %p59, %p60
      %p62 = scmp.ne.s32.totalorder %s53, %s54
      %p63 = scmp.eq.s32.totalorder %s27, 0
      %p64 = por %p62, %p63
      %p65 = scmp.ne.s32.totalorder %s53, %s54
      %p66 = scmp.eq.s32.totalorder %s28, 3
      %p67 = por %p65, %p66
      %p69 = scmp.ne.s32.totalorder %s54, %s68
      %p70 = scmp.eq.s32.totalorder %s28, 0
      %p71 = por %p69, %p70
      %s72 = smul.u32 %s22, 4
      %s73 = ssub.s32 %s72, 1
      %p74 = scmp.gt.s32.totalorder %s73, 0
      %s75 = scalar_select %p74, %s73, 0
      %s76 = smul.u32 %s29, 4
      %s77 = ssub.s32 %s76, 1
      %p78 = scmp.gt.s32.totalorder %s77, 0
      %s79 = scalar_select %p78, %s77, 0
      %s80 = ssub.s32 %s75, %s79
      %p81 = scmp.eq.s32.totalorder %s80, 0
      %s83 = sadd.s32 %s82, 1
      %s84 = scalar_select %p81, %s82, %s83
      %p87 = pneg %p81
      %p88 = scmp.eq.s32.totalorder %s22, 3
      %p89 = por %p87, %p88
      %p90 = scmp.ne.s32.totalorder %s82, %s85
      %p91 = scmp.eq.s32.totalorder %s22, 0
      %p92 = por %p90, %p91
      %p93 = scmp.ne.s32.totalorder %s82, %s85
      %p94 = scmp.eq.s32.totalorder %s27, 3
      %p95 = por %p93, %p94
      %p96 = scmp.ne.s32.totalorder %s85, %s86
      %p97 = scmp.eq.s32.totalorder %s27, 0
      %p98 = por %p96, %p97
      %p99 = scmp.ne.s32.totalorder %s85, %s86
      %p100 = scmp.eq.s32.totalorder %s28, 3
      %p101 = por %p99, %p100
      %p103 = scmp.ne.s32.totalorder %s86, %s102
      %p104 = scmp.eq.s32.totalorder %s28, 0
      %p105 = por %p103, %p104
      %s106 = ssub.s32 %s22, %s29
      %p107 = scmp.eq.s32.totalorder %s106, 0
      %s109 = sadd.s32 %s108, 1
      %s110 = scalar_select %p107, %s108, %s109
      %p113 = pneg %p107
      %p114 = scmp.eq.s32.totalorder %s22, 3
      %p115 = por %p113, %p114
      %p116 = scmp.ne.s32.totalorder %s108, %s111
      %p117 = scmp.eq.s32.totalorder %s22, 0
      %p118 = por %p116, %p117
      %p119 = scmp.ne.s32.totalorder %s108, %s111
      %p120 = scmp.eq.s32.totalorder %s27, 3
      %p121 = por %p119, %p120
      %p122 = scmp.ne.s32.totalorder %s111, %s112
      %p123 = scmp.eq.s32.totalorder %s27, 0
      %p124 = por %p122, %p123
      %p125 = scmp.ne.s32.totalorder %s111, %s112
      %p126 = scmp.eq.s32.totalorder %s28, 3
      %p127 = por %p125, %p126
      %p129 = scmp.ne.s32.totalorder %s112, %s128
      %p130 = scmp.eq.s32.totalorder %s28, 0
      %p131 = por %p129, %p130
      %s132 = sadd.s32 %s22, 1
      %s133 = smul.u32 %s132, 4
      %p134 = scmp.lt.s32.totalorder %s133, 15
      %s135 = scalar_select %p134, %s133, 15
      %s136 = sadd.s32 %s29, 1
      %s137 = smul.u32 %s136, 4
      %p138 = scmp.lt.s32.totalorder %s137, 15
      %s139 = scalar_select %p138, %s137, 15
      %s140 = ssub.s32 %s135, %s139
      %p141 = scmp.eq.s32.totalorder %s140, 0
      %s143 = sadd.s32 %s142, 1
      %s144 = scalar_select %p141, %s142, %s143
      %p147 = pneg %p141
      %p148 = scmp.eq.s32.totalorder %s22, 3
      %p149 = por %p147, %p148
      %p150 = scmp.ne.s32.totalorder %s142, %s145
      %p151 = scmp.eq.s32.totalorder %s22, 0
      %p152 = por %p150, %p151
      %p153 = scmp.ne.s32.totalorder %s142, %s145
      %p154 = scmp.eq.s32.totalorder %s27, 3
      %p155 = por %p153, %p154
      %p156 = scmp.ne.s32.totalorder %s145, %s146
      %p157 = scmp.eq.s32.totalorder %s27, 0
      %p158 = por %p156, %p157
      %p159 = scmp.ne.s32.totalorder %s145, %s146
      %p160 = scmp.eq.s32.totalorder %s28, 3
      %p161 = por %p159, %p160
      %p163 = scmp.ne.s32.totalorder %s146, %s162
      %p164 = scmp.eq.s32.totalorder %s28, 0
      %p165 = por %p163, %p164
      %s167 = sadd.s32 %s166, 1
      %p170 = scmp.eq.s32.totalorder %s22, 3
      %p171 = scmp.ne.s32.totalorder %s166, %s168
      %p172 = scmp.eq.s32.totalorder %s22, 0
      %p173 = por %p171, %p172
      %p174 = scmp.ne.s32.totalorder %s166, %s168
      %p175 = scmp.eq.s32.totalorder %s27, 3
      %p176 = por %p174, %p175
      %p177 = scmp.ne.s32.totalorder %s168, %s169
      %p178 = scmp.eq.s32.totalorder %s27, 0
      %p179 = por %p177, %p178
      %p180 = scmp.ne.s32.totalorder %s168, %s169
      %p181 = scmp.eq.s32.totalorder %s28, 3
      %p182 = por %p180, %p181
      %p184 = scmp.ne.s32.totalorder %s169, %s183
      %p185 = scmp.eq.s32.totalorder %s28, 0
      %p186 = por %p184, %p185
      %s187 = ssub.s32 %s22, %s29
      %p188 = scmp.eq.s32.totalorder %s187, 0
      %s190 = sadd.s32 %s189, 1
      %s191 = scalar_select %p188, %s189, %s190
      %p194 = pneg %p188
      %p195 = scmp.eq.s32.totalorder %s22, 3
      %p196 = por %p194, %p195
      %p197 = scmp.ne.s32.totalorder %s189, %s192
      %p198 = scmp.eq.s32.totalorder %s22, 0
      %p199 = por %p197, %p198
      %p200 = scmp.ne.s32.totalorder %s189, %s192
      %p201 = scmp.eq.s32.totalorder %s27, 3
      %p202 = por %p200, %p201
      %p203 = scmp.ne.s32.totalorder %s192, %s193
      %p204 = scmp.eq.s32.totalorder %s27, 0
      %p205 = por %p203, %p204
      %p206 = scmp.ne.s32.totalorder %s192, %s193
      %p207 = scmp.eq.s32.totalorder %s28, 3
      %p208 = por %p206, %p207
      %p210 = scmp.ne.s32.totalorder %s193, %s209
      %p211 = scmp.eq.s32.totalorder %s28, 0
      %p212 = por %p210, %p211
      %s213 = ssub.s32 %s22, %s29
      %p214 = scmp.eq.s32.totalorder %s213, 0
      %s216 = sadd.s32 %s215, 1
      %s217 = scalar_select %p214, %s215, %s216
      %p220 = pneg %p214
      %p221 = scmp.eq.s32.totalorder %s22, 3
      %p222 = por %p220, %p221
      %p223 = scmp.ne.s32.totalorder %s215, %s218
      %p224 = scmp.eq.s32.totalorder %s22, 0
      %p225 = por %p223, %p224
      %p226 = scmp.ne.s32.totalorder %s215, %s218
      %p227 = scmp.eq.s32.totalorder %s27, 3
      %p228 = por %p226, %p227
      %p229 = scmp.ne.s32.totalorder %s218, %s219
      %p230 = scmp.eq.s32.totalorder %s27, 0
      %p231 = por %p229, %p230
      %p232 = scmp.ne.s32.totalorder %s218, %s219
      %p233 = scmp.eq.s32.totalorder %s28, 3
      %p234 = por %p232, %p233
      %p236 = scmp.ne.s32.totalorder %s219, %s235
      %p237 = scmp.eq.s32.totalorder %s28, 0
      %p238 = por %p236, %p237
      %p239 = scmp.le.s32.totalorder 1, %s22
      %p240 = scmp.lt.s32.totalorder %s22, 5
      %p241 = pnand %p239, %p240
      %p242 = pneg %p241
      // Predicated region
      $region9: #{tpu_custom_call.1} parent=5 // pred_check
        _
      $region10: #{tpu_custom_call.1} parent=5 // pred_check_branch
        %244 = sbr.rel (%p241) target = $region12
      $region11: #{tpu_custom_call.1} parent=5 // pred_region
        %s245 = ssub.s32 %s22, 1
        // Predicated region
        $region13: #{tpu_custom_call.1} parent=11 // pred_check
          %p246 = pneg %p43
        $region14: #{tpu_custom_call.1} parent=11 // pred_check_branch
          %248 = sbr.rel (%p246) target = $region16
        $region15: #{tpu_custom_call.1} parent=11 // pred_region
          %250 = vsyncadd [#allocation5], 0
          %s252 = sshll.u32 %s0, 4
          %s253 = int_to_ptr.hbm [resolvable:$true] %s252
          %s254 = sshll.u32 [#allocation4], 4
          %s255 = int_to_ptr.vmem [resolvable:$true] %s254
          %257 = dma.hbm_to_vmem [thread:$0]  %s253, 16, %s255, [#allocation5]
        $region16: #{tpu_custom_call.1} parent=11 // pred_fallthru
          _
        // Predicated region
        $region17: #{tpu_custom_call.1} parent=11 // pred_check
          %p258 = pneg %p64
        $region18: #{tpu_custom_call.1} parent=11 // pred_check_branch
          %260 = sbr.rel (%p258) target = $region20
        $region19: #{tpu_custom_call.1} parent=11 // pred_region
          %262 = vsyncadd [#allocation8], 0
          %s264 = sshll.u32 %s1, 4
          %s265 = int_to_ptr.hbm [resolvable:$true] %s264
          %s266 = sshll.u32 [#allocation7], 4
          %s267 = int_to_ptr.vmem [resolvable:$true] %s266
          %269 = dma.hbm_to_vmem [thread:$0]  %s265, 16, %s267, [#allocation8]
        $region20: #{tpu_custom_call.1} parent=11 // pred_fallthru
          _
        // Predicated region
        $region21: #{tpu_custom_call.1} parent=11 // pred_check
          %p270 = pneg %p179
        $region22: #{tpu_custom_call.1} parent=11 // pred_check_branch
          %272 = sbr.rel (%p270) target = $region24
        $region23: #{tpu_custom_call.1} parent=11 // pred_region
          %274 = vsyncadd [#allocation8], 0
          %s275 = sshll.u32 %s5, 4
          %s276 = int_to_ptr.hbm [resolvable:$true] %s275
          %s277 = sshll.u32 [#allocation12], 4
          %s278 = int_to_ptr.vmem [resolvable:$true] %s277
          %283 = dma.hbm_to_vmem [thread:$0]  %s276, 6144, %s278, [#allocation8], 64, 64, 4
        $region24: #{tpu_custom_call.1} parent=11 // pred_fallthru
          _
      $region12: #{tpu_custom_call.1} parent=5 // pred_fallthru
        _
      %p284 = scmp.lt.s32.totalorder %s22, 4
      // Predicated region
      $region25: #{tpu_custom_call.1} parent=5 // pred_check
        %p285 = pneg %p284
      $region26: #{tpu_custom_call.1} parent=5 // pred_check_branch
        %287 = sbr.rel (%p285) target = $region28
      $region27: #{tpu_custom_call.1} parent=5 // pred_region
        // Predicated region
        $region29: #{tpu_custom_call.1} parent=27 // pred_check
          %p288 = pneg %p92
        $region30: #{tpu_custom_call.1} parent=27 // pred_check_branch
          %290 = sbr.rel (%p288) target = $region32
        $region31: #{tpu_custom_call.1} parent=27 // pred_region
          %s291 = sand.u32 %s22, 1
          %s292 = scalar_lea.sflag [#allocation5], %s291
          %s293 = sand.u32 %s82, 1
          %s294 = smul.addr %s293, 16
          %s295 = scalar_lea.vmem [#allocation9], %s294
          %s296 = smul.u32 %s22, 4
          %s297 = ssub.s32 %s296, 1
          %p298 = scmp.gt.s32.totalorder %s297, 0
          %s299 = scalar_select %p298, %s297, 0
          %301 = vsyncadd %s292, 0
          %s302 = smul.addr %s299, 8
          %s303 = scalar_lea.hbm %s2, %s302
          %s304 = sshll.u32 %s303, 4
          %s305 = int_to_ptr.hbm [resolvable:$true] %s304
          %s306 = sshll.u32 %s295, 4
          %s307 = int_to_ptr.vmem [resolvable:$true] %s306
          %312 = dma.hbm_to_vmem [thread:$0]  %s305, 256, %s307, %s292, 2048, 128, 8
        $region32: #{tpu_custom_call.1} parent=27 // pred_fallthru
          _
        // Predicated region
        $region33: #{tpu_custom_call.1} parent=27 // pred_check
          %p313 = pneg %p118
        $region34: #{tpu_custom_call.1} parent=27 // pred_check_branch
          %315 = sbr.rel (%p313) target = $region36
        $region35: #{tpu_custom_call.1} parent=27 // pred_region
          #allocation17 [shape = 'u32[6]{0}', space=smem, size = 0x18, scoped, tag = 'DMA stride descriptor']
          %s316 = sand.u32 %s22, 1
          %s317 = scalar_lea.sflag [#allocation5], %s316
          %s318 = sand.u32 %s108, 1
          %s319 = smul.addr %s318, 64
          %s320 = scalar_lea.vmem [#allocation10], %s319
          %s321 = smul.u32 4, %s22
          %323 = vsyncadd %s317, 0
          %s324 = smul.addr %s321, 8
          %s325 = scalar_lea.hbm %s3, %s324
          %s327 = sshll.u32 1, 14
          %s328 = sxor.u32 4294967295, %s327
          %s330 = sld [smem:[#allocation0]]
          %s331 = sadd.s32 2, %s330
          %s333 = sshll.u32 7, 26
          %s334 = sxor.u32 4294967295, %s333
          %s335 = sand.u32 0, %s334
          %s336 = sshll.u32 %s331, 26
          %s337 = sor.u32 %s335, %s336
          %s338 = sshll.u32 %s325, 4
          %s339 = int_to_ptr.hbm [resolvable:$true] %s338
          %s340 = sshll.u32 %s320, 4
          %s341 = int_to_ptr.vmem [resolvable:$true] %s340
          %347 = sst [smem:[#allocation17]] 2048
          %s348 = scalar_lea.smem [#allocation17], 1
          %349 = sst [smem:[%s348]] 512
          %s350 = scalar_lea.smem [#allocation17], 2
          %351 = sst [smem:[%s350]] 4
          %s352 = scalar_lea.smem [#allocation17], 3
          %353 = sst [smem:[%s352]] 128
          %s354 = scalar_lea.smem [#allocation17], 4
          %355 = sst [smem:[%s354]] 128
          %s356 = scalar_lea.smem [#allocation17], 5
          %357 = sst [smem:[%s356]] 8
          %359 = dma.general %s339, 1024, %s341, %s317, [#allocation16], [#allocation17], %s337, 0
        $region36: #{tpu_custom_call.1} parent=27 // pred_fallthru
          _
        // Predicated region
        $region37: #{tpu_custom_call.1} parent=27 // pred_check
          %p360 = pneg %p152
        $region38: #{tpu_custom_call.1} parent=27 // pred_check_branch
          %362 = sbr.rel (%p360) target = $region40
        $region39: #{tpu_custom_call.1} parent=27 // pred_region
          %s363 = sand.u32 %s22, 1
          %s364 = scalar_lea.sflag [#allocation5], %s363
          %s365 = sand.u32 %s142, 1
          %s366 = smul.addr %s365, 16
          %s367 = scalar_lea.vmem [#allocation11], %s366
          %s368 = sadd.s32 %s22, 1
          %s369 = smul.u32 %s368, 4
          %p370 = scmp.lt.s32.totalorder %s369, 15
          %s371 = scalar_select %p370, %s369, 15
          %373 = vsyncadd %s364, 0
          %s374 = smul.addr %s371, 8
          %s375 = scalar_lea.hbm %s4, %s374
          %s376 = sshll.u32 %s375, 4
          %s377 = int_to_ptr.hbm [resolvable:$true] %s376
          %s378 = sshll.u32 %s367, 4
          %s379 = int_to_ptr.vmem [resolvable:$true] %s378
          %384 = dma.hbm_to_vmem [thread:$0]  %s377, 256, %s379, %s364, 2048, 128, 8
        $region40: #{tpu_custom_call.1} parent=27 // pred_fallthru
          _
      $region28: #{tpu_custom_call.1} parent=5 // pred_fallthru
        _
      %p385 = scmp.le.s32.totalorder 1, %s22
      %p386 = scmp.lt.s32.totalorder %s22, 5
      %p387 = pnand %p385, %p386
      %p388 = pneg %p387
      // Predicated region
      $region41: #{tpu_custom_call.1} parent=5 // pred_check
        _
      $region42: #{tpu_custom_call.1} parent=5 // pred_check_branch
        %390 = sbr.rel (%p387) target = $region44
      $region43: #{tpu_custom_call.1} parent=5 // pred_region
        %s391 = ssub.s32 %s22, 1
        // Predicated region
        $region45: #{tpu_custom_call.1} parent=43 // pred_check
          %p392 = pneg %p43
        $region46: #{tpu_custom_call.1} parent=43 // pred_check_branch
          %394 = sbr.rel (%p392) target = $region48
        $region47: #{tpu_custom_call.1} parent=43 // pred_region
          %396 = dma.done [#allocation5], 16
        $region48: #{tpu_custom_call.1} parent=43 // pred_fallthru
          _
        // Predicated region
        $region49: #{tpu_custom_call.1} parent=43 // pred_check
          %p397 = pneg %p64
        $region50: #{tpu_custom_call.1} parent=43 // pred_check_branch
          %399 = sbr.rel (%p397) target = $region52
        $region51: #{tpu_custom_call.1} parent=43 // pred_region
          %401 = dma.done [#allocation8], 16
        $region52: #{tpu_custom_call.1} parent=43 // pred_fallthru
          _
        %s402 = sand.u32 %s27, 1
        %s403 = scalar_lea.sflag [#allocation5], %s402
        %s404 = sand.u32 %s85, 1
        %s405 = smul.addr %s404, 16
        %s406 = scalar_lea.vmem [#allocation9], %s405
        // Predicated region
        $region53: #{tpu_custom_call.1} parent=43 // pred_check
          %p407 = pneg %p98
        $region54: #{tpu_custom_call.1} parent=43 // pred_check_branch
          %409 = sbr.rel (%p407) target = $region56
        $region55: #{tpu_custom_call.1} parent=43 // pred_region
          %411 = dma.done %s403, 256
        $region56: #{tpu_custom_call.1} parent=43 // pred_fallthru
          _
        %s412 = sand.u32 %s27, 1
        %s413 = scalar_lea.sflag [#allocation5], %s412
        %s414 = sand.u32 %s111, 1
        %s415 = smul.addr %s414, 64
        %s416 = scalar_lea.vmem [#allocation10], %s415
        // Predicated region
        $region57: #{tpu_custom_call.1} parent=43 // pred_check
          %p417 = pneg %p124
        $region58: #{tpu_custom_call.1} parent=43 // pred_check_branch
          %419 = sbr.rel (%p417) target = $region60
        $region59: #{tpu_custom_call.1} parent=43 // pred_region
          %421 = dma.done %s413, 1024
        $region60: #{tpu_custom_call.1} parent=43 // pred_fallthru
          _
        %s422 = sand.u32 %s27, 1
        %s423 = scalar_lea.sflag [#allocation5], %s422
        %s424 = sand.u32 %s145, 1
        %s425 = smul.addr %s424, 16
        %s426 = scalar_lea.vmem [#allocation11], %s425
        // Predicated region
        $region61: #{tpu_custom_call.1} parent=43 // pred_check
          %p427 = pneg %p158
        $region62: #{tpu_custom_call.1} parent=43 // pred_check_branch
          %429 = sbr.rel (%p427) target = $region64
        $region63: #{tpu_custom_call.1} parent=43 // pred_region
          %431 = dma.done %s423, 256
        $region64: #{tpu_custom_call.1} parent=43 // pred_fallthru
          _
        // Predicated region
        $region65: #{tpu_custom_call.1} parent=43 // pred_check
          %p432 = pneg %p179
        $region66: #{tpu_custom_call.1} parent=43 // pred_check_branch
          %434 = sbr.rel (%p432) target = $region68
        $region67: #{tpu_custom_call.1} parent=43 // pred_region
          %436 = dma.done [#allocation8], 6144
        $region68: #{tpu_custom_call.1} parent=43 // pred_fallthru
          _
        %p437 = pneg %p43
        %p438 = pneg %p40
        %p439 = pneg %p64
        %p440 = pneg %p61
        %s441 = sand.u32 %s27, 1
        %s442 = scalar_lea.sflag [#allocation5], %s441
        %s443 = sand.u32 %s85, 1
        %s444 = smul.addr %s443, 16
        %s445 = scalar_lea.vmem [#allocation9], %s444
        %p446 = pneg %p98
        %p447 = pneg %p95
        %s448 = sand.u32 %s27, 1
        %s449 = scalar_lea.sflag [#allocation5], %s448
        %s450 = sand.u32 %s111, 1
        %s451 = smul.addr %s450, 64
        %s452 = scalar_lea.vmem [#allocation10], %s451
        %p453 = pneg %p124
        %p454 = pneg %p121
        %s455 = sand.u32 %s27, 1
        %s456 = scalar_lea.sflag [#allocation5], %s455
        %s457 = sand.u32 %s145, 1
        %s458 = smul.addr %s457, 16
        %s459 = scalar_lea.vmem [#allocation11], %s458
        %p460 = pneg %p158
        %p461 = pneg %p155
        %p462 = pneg %p179
        %p463 = pneg %p176
        %p464 = pneg %p205
        %p465 = pneg %p202
        %s466 = sand.u32 %s192, 1
        %s467 = scalar_lea.sflag [#allocation6], %s466
        %s468 = sand.u32 %s192, 1
        %s469 = smul.addr %s468, 64
        %s470 = scalar_lea.vmem [#allocation13], %s469
        %p471 = pneg %p231
        %p472 = pneg %p228
        %s473 = sand.u32 %s218, 1
        %s474 = scalar_lea.sflag [#allocation15], %s473
        %s475 = sand.u32 %s218, 1
        %s476 = smul.addr %s475, 2
        %s477 = scalar_lea.vmem [#allocation14], %s476
        %s478 = smul.u32 %s27, 4
        %s479 = ssub.s32 %s478, 1
        %p480 = scmp.gt.s32.totalorder %s479, 0
        %s481 = scalar_select %p480, %s479, 0
        %s482 = smul.u32 4, %s27
        %s483 = sadd.s32 %s27, 1
        %s484 = smul.u32 %s483, 4
        %p485 = scmp.lt.s32.totalorder %s484, 15
        %s486 = scalar_select %p485, %s484, 15
        %s487 = smul.u32 4, %s27
        %vm489 = vcmask 516096
        %vm490 = vsmask.f32 256
        %vm491 = vmand %vm489, %vm490
        %v492 = vld [vmem:[#allocation2] sm:$0x1]
        %v493 = vsel %vm491, 0, %v492
        %494 = vst [vmem:[#allocation2] sm:$0x1] %v493
        %v495 = vld [vmem:[#allocation2 + $0x8] sm:$0x1]
        %v496 = vsel %vm491, 0, %v495
        %497 = vst [vmem:[#allocation2 + $0x8] sm:$0x1] %v496
        %v498 = vld [vmem:[#allocation2 + $0x10] sm:$0x1]
        %v499 = vsel %vm491, 0, %v498
        %500 = vst [vmem:[#allocation2 + $0x10] sm:$0x1] %v499
        %v501 = vld [vmem:[#allocation2 + $0x18] sm:$0x1]
        %v502 = vsel %vm491, 0, %v501
        %503 = vst [vmem:[#allocation2 + $0x18] sm:$0x1] %v502
        %v504 = vld [vmem:[#allocation2 + $0x20] sm:$0x1]
        %v505 = vsel %vm491, 0, %v504
        %506 = vst [vmem:[#allocation2 + $0x20] sm:$0x1] %v505
        %v507 = vld [vmem:[#allocation2 + $0x28] sm:$0x1]
        %v508 = vsel %vm491, 0, %v507
        %509 = vst [vmem:[#allocation2 + $0x28] sm:$0x1] %v508
        %v510 = vld [vmem:[#allocation2 + $0x30] sm:$0x1]
        %v511 = vsel %vm491, 0, %v510
        %512 = vst [vmem:[#allocation2 + $0x30] sm:$0x1] %v511
        %v513 = vld [vmem:[#allocation2 + $0x38] sm:$0x1]
        %v514 = vsel %vm491, 0, %v513
        %515 = vst [vmem:[#allocation2 + $0x38] sm:$0x1] %v514
        %v516 = vld [vmem:[#allocation2 + $0x40] sm:$0x1]
        %v517 = vsel %vm491, 0, %v516
        %518 = vst [vmem:[#allocation2 + $0x40] sm:$0x1] %v517
        %v519 = vld [vmem:[#allocation2 + $0x48] sm:$0x1]
        %v520 = vsel %vm491, 0, %v519
        %521 = vst [vmem:[#allocation2 + $0x48] sm:$0x1] %v520
        %v522 = vld [vmem:[#allocation2 + $0x50] sm:$0x1]
        %v523 = vsel %vm491, 0, %v522
        %524 = vst [vmem:[#allocation2 + $0x50] sm:$0x1] %v523
        %v525 = vld [vmem:[#allocation2 + $0x58] sm:$0x1]
        %v526 = vsel %vm491, 0, %v525
        %527 = vst [vmem:[#allocation2 + $0x58] sm:$0x1] %v526
        %vm528 = vcmask 1040896
        %vm529 = vmand %vm528, %vm490
        %v530 = vld [vmem:[#allocation2 + $0x4] sm:$0x1]
        %v531 = vsel %vm529, 0, %v530
        %532 = vst [vmem:[#allocation2 + $0x4] sm:$0x1] %v531
        %v533 = vld [vmem:[#allocation2 + $0xc] sm:$0x1]
        %v534 = vsel %vm529, 0, %v533
        %535 = vst [vmem:[#allocation2 + $0xc] sm:$0x1] %v534
        %v536 = vld [vmem:[#allocation2 + $0x14] sm:$0x1]
        %v537 = vsel %vm529, 0, %v536
        %538 = vst [vmem:[#allocation2 + $0x14] sm:$0x1] %v537
        %v539 = vld [vmem:[#allocation2 + $0x1c] sm:$0x1]
        %v540 = vsel %vm529, 0, %v539
        %541 = vst [vmem:[#allocation2 + $0x1c] sm:$0x1] %v540
        %v542 = vld [vmem:[#allocation2 + $0x24] sm:$0x1]
        %v543 = vsel %vm529, 0, %v542
        %544 = vst [vmem:[#allocation2 + $0x24] sm:$0x1] %v543
        %v545 = vld [vmem:[#allocation2 + $0x2c] sm:$0x1]
        %v546 = vsel %vm529, 0, %v545
        %547 = vst [vmem:[#allocation2 + $0x2c] sm:$0x1] %v546
        %v548 = vld [vmem:[#allocation2 + $0x34] sm:$0x1]
        %v549 = vsel %vm529, 0, %v548
        %550 = vst [vmem:[#allocation2 + $0x34] sm:$0x1] %v549
        %v551 = vld [vmem:[#allocation2 + $0x3c] sm:$0x1]
        %v552 = vsel %vm529, 0, %v551
        %553 = vst [vmem:[#allocation2 + $0x3c] sm:$0x1] %v552
        %v554 = vld [vmem:[#allocation2 + $0x44] sm:$0x1]
        %v555 = vsel %vm529, 0, %v554
        %556 = vst [vmem:[#allocation2 + $0x44] sm:$0x1] %v555
        %v557 = vld [vmem:[#allocation2 + $0x4c] sm:$0x1]
        %v558 = vsel %vm529, 0, %v557
        %559 = vst [vmem:[#allocation2 + $0x4c] sm:$0x1] %v558
        %v560 = vld [vmem:[#allocation2 + $0x54] sm:$0x1]
        %v561 = vsel %vm529, 0, %v560
        %562 = vst [vmem:[#allocation2 + $0x54] sm:$0x1] %v561
        %v563 = vld [vmem:[#allocation2 + $0x5c] sm:$0x1]
        %v564 = vsel %vm529, 0, %v563
        %565 = vst [vmem:[#allocation2 + $0x5c] sm:$0x1] %v564
        %v566 = vld [vmem:[%s406] sm:$0xff]
        %v567 = vld [vmem:[%s406 + $0x8] sm:$0xff]
        %v568 = vpack.c.bf16 %v566, %v566
        %v569 = vpack.c.bf16 %v567, %v567
        %572 = vrot.lane.b32.xlu0 %v568, 64
        %v573 = vpop.permute.xlu0 %572
        %574 = vrot.lane.b32.xlu0 %v569, 64
        %v575 = vpop.permute.xlu0 %574
        %vm578 = vcmask 1043968
        %579 = vst.msk [vmem:[#allocation2] sm:$0xf] %vm578, %v573
        %580 = vst.msk [vmem:[#allocation2 + $0x30] sm:$0xf] %vm578, %v575
        %v582 = vshrl.u32 %v568, 16
        %v584 = vrot.slane %v582, 7
        %v585 = vshll.u32 %v568, 16
        %v587 = vor.u32 %v584, %v585
        %v588 = vrot.slane %v584, 4
        %v590 = vshrl.u32 %v569, 16
        %v592 = vrot.slane %v590, 7
        %v593 = vshll.u32 %v569, 16
        %v595 = vor.u32 %v592, %v593
        %v596 = vrot.slane %v592, 4
        %597 = vrot.lane.b32.xlu0 %v587, 64
        %v598 = vpop.permute.xlu0 %597
        %599 = vrot.lane.b32.xlu0 %v588, 64
        %v600 = vpop.permute.xlu0 %599
        %601 = vrot.lane.b32.xlu0 %v595, 64
        %v602 = vpop.permute.xlu0 %601
        %603 = vrot.lane.b32.xlu0 %v596, 64
        %v604 = vpop.permute.xlu0 %603
        %vm609 = vcmask 519168
        %vm610 = vsmask.f32 7938
        %vm611 = vmand %vm609, %vm610
        %v612 = vld [vmem:[#allocation2] sm:$0xf]
        %v613 = vsel %vm611, %v598, %v612
        %614 = vst [vmem:[#allocation2] sm:$0xf] %v613
        %v615 = vld [vmem:[#allocation2 + $0x4] sm:$0x1]
        %v616 = vsel %vm491, %v600, %v615
        %617 = vst [vmem:[#allocation2 + $0x4] sm:$0x1] %v616
        %v618 = vld [vmem:[#allocation2 + $0x30] sm:$0xf]
        %v619 = vsel %vm611, %v602, %v618
        %620 = vst [vmem:[#allocation2 + $0x30] sm:$0xf] %v619
        %v621 = vld [vmem:[#allocation2 + $0x34] sm:$0x1]
        %v622 = vsel %vm491, %v604, %v621
        %623 = vst [vmem:[#allocation2 + $0x34] sm:$0x1] %v622
        %v624 = vld [vmem:[%s416] sm:$0xff]
        %v625 = vld [vmem:[%s416 + $0x8] sm:$0xff]
        %v626 = vld [vmem:[%s416 + $0x10] sm:$0xff]
        %v627 = vld [vmem:[%s416 + $0x18] sm:$0xff]
        %v628 = vld [vmem:[%s416 + $0x20] sm:$0xff]
        %v629 = vld [vmem:[%s416 + $0x28] sm:$0xff]
        %v630 = vld [vmem:[%s416 + $0x30] sm:$0xff]
        %v631 = vld [vmem:[%s416 + $0x38] sm:$0xff]
        %v632 = vpack.c.bf16 %v624, %v624
        %v633 = vpack.c.bf16 %v625, %v625
        %v634 = vpack.c.bf16 %v626, %v626
        %v635 = vpack.c.bf16 %v627, %v627
        %v636 = vpack.c.bf16 %v628, %v628
        %v637 = vpack.c.bf16 %v629, %v629
        %v638 = vpack.c.bf16 %v630, %v630
        %v639 = vpack.c.bf16 %v631, %v631
        %648 = vrot.lane.b32.xlu0 %v632, 64
        %v649 = vpop.permute.xlu0 %648
        %650 = vrot.lane.b32.xlu0 %v633, 64
        %v651 = vpop.permute.xlu0 %650
        %652 = vrot.lane.b32.xlu0 %v634, 64
        %v653 = vpop.permute.xlu0 %652
        %654 = vrot.lane.b32.xlu0 %v635, 64
        %v655 = vpop.permute.xlu0 %654
        %656 = vrot.lane.b32.xlu0 %v636, 64
        %v657 = vpop.permute.xlu0 %656
        %658 = vrot.lane.b32.xlu0 %v637, 64
        %v659 = vpop.permute.xlu0 %658
        %660 = vrot.lane.b32.xlu0 %v638, 64
        %v661 = vpop.permute.xlu0 %660
        %662 = vrot.lane.b32.xlu0 %v639, 64
        %v663 = vpop.permute.xlu0 %662
        %s672 = scalar_lea.vmem [#allocation2], 8
        %673 = vst.msk [vmem:[%s672] sm:$0xf] %vm578, %v649
        %674 = vst.msk [vmem:[%s672 + $0x8] sm:$0xf] %vm578, %v651
        %675 = vst.msk [vmem:[%s672 + $0x10] sm:$0xf] %vm578, %v653
        %676 = vst.msk [vmem:[%s672 + $0x18] sm:$0xf] %vm578, %v655
        %677 = vst.msk [vmem:[%s672 + $0x30] sm:$0xf] %vm578, %v657
        %678 = vst.msk [vmem:[%s672 + $0x38] sm:$0xf] %vm578, %v659
        %679 = vst.msk [vmem:[%s672 + $0x40] sm:$0xf] %vm578, %v661
        %680 = vst.msk [vmem:[%s672 + $0x48] sm:$0xf] %vm578, %v663
        %v682 = vshrl.u32 %v632, 16
        %v684 = vrot.slane %v682, 7
        %v685 = vshll.u32 %v632, 16
        %v687 = vor.u32 %v684, %v685
        %v688 = vrot.slane %v684, 4
        %v690 = vshrl.u32 %v633, 16
        %v692 = vrot.slane %v690, 7
        %v693 = vshll.u32 %v633, 16
        %v695 = vor.u32 %v692, %v693
        %v696 = vrot.slane %v692, 4
        %v698 = vshrl.u32 %v634, 16
        %v700 = vrot.slane %v698, 7
        %v701 = vshll.u32 %v634, 16
        %v703 = vor.u32 %v700, %v701
        %v704 = vrot.slane %v700, 4
        %v706 = vshrl.u32 %v635, 16
        %v708 = vrot.slane %v706, 7
        %v709 = vshll.u32 %v635, 16
        %v711 = vor.u32 %v708, %v709
        %v712 = vrot.slane %v708, 4
        %v714 = vshrl.u32 %v636, 16
        %v716 = vrot.slane %v714, 7
        %v717 = vshll.u32 %v636, 16
        %v719 = vor.u32 %v716, %v717
        %v720 = vrot.slane %v716, 4
        %v722 = vshrl.u32 %v637, 16
        %v724 = vrot.slane %v722, 7
        %v725 = vshll.u32 %v637, 16
        %v727 = vor.u32 %v724, %v725
        %v728 = vrot.slane %v724, 4
        %v730 = vshrl.u32 %v638, 16
        %v732 = vrot.slane %v730, 7
        %v733 = vshll.u32 %v638, 16
        %v735 = vor.u32 %v732, %v733
        %v736 = vrot.slane %v732, 4
        %v738 = vshrl.u32 %v639, 16
        %v740 = vrot.slane %v738, 7
        %v741 = vshll.u32 %v639, 16
        %v743 = vor.u32 %v740, %v741
        %v744 = vrot.slane %v740, 4
        %745 = vrot.lane.b32.xlu0 %v687, 64
        %v746 = vpop.permute.xlu0 %745
        %747 = vrot.lane.b32.xlu0 %v688, 64
        %v748 = vpop.permute.xlu0 %747
        %749 = vrot.lane.b32.xlu0 %v695, 64
        %v750 = vpop.permute.xlu0 %749
        %751 = vrot.lane.b32.xlu0 %v696, 64
        %v752 = vpop.permute.xlu0 %751
        %753 = vrot.lane.b32.xlu0 %v703, 64
        %v754 = vpop.permute.xlu0 %753
        %755 = vrot.lane.b32.xlu0 %v704, 64
        %v756 = vpop.permute.xlu0 %755
        %757 = vrot.lane.b32.xlu0 %v711, 64
        %v758 = vpop.permute.xlu0 %757
        %759 = vrot.lane.b32.xlu0 %v712, 64
        %v760 = vpop.permute.xlu0 %759
        %761 = vrot.lane.b32.xlu0 %v719, 64
        %v762 = vpop.permute.xlu0 %761
        %763 = vrot.lane.b32.xlu0 %v720, 64
        %v764 = vpop.permute.xlu0 %763
        %765 = vrot.lane.b32.xlu0 %v727, 64
        %v766 = vpop.permute.xlu0 %765
        %767 = vrot.lane.b32.xlu0 %v728, 64
        %v768 = vpop.permute.xlu0 %767
        %769 = vrot.lane.b32.xlu0 %v735, 64
        %v770 = vpop.permute.xlu0 %769
        %771 = vrot.lane.b32.xlu0 %v736, 64
        %v772 = vpop.permute.xlu0 %771
        %773 = vrot.lane.b32.xlu0 %v743, 64
        %v774 = vpop.permute.xlu0 %773
        %775 = vrot.lane.b32.xlu0 %v744, 64
        %v776 = vpop.permute.xlu0 %775
        %v793 = vld [vmem:[%s672] sm:$0xf]
        %v794 = vsel %vm611, %v746, %v793
        %795 = vst [vmem:[%s672] sm:$0xf] %v794
        %v796 = vld [vmem:[%s672 + $0x4] sm:$0x1]
        %v797 = vsel %vm491, %v748, %v796
        %798 = vst [vmem:[%s672 + $0x4] sm:$0x1] %v797
        %v799 = vld [vmem:[%s672 + $0x8] sm:$0xf]
        %v800 = vsel %vm611, %v750, %v799
        %801 = vst [vmem:[%s672 + $0x8] sm:$0xf] %v800
        %v802 = vld [vmem:[%s672 + $0xc] sm:$0x1]
        %v803 = vsel %vm491, %v752, %v802
        %804 = vst [vmem:[%s672 + $0xc] sm:$0x1] %v803
        %v805 = vld [vmem:[%s672 + $0x10] sm:$0xf]
        %v806 = vsel %vm611, %v754, %v805
        %807 = vst [vmem:[%s672 + $0x10] sm:$0xf] %v806
        %v808 = vld [vmem:[%s672 + $0x14] sm:$0x1]
        %v809 = vsel %vm491, %v756, %v808
        %810 = vst [vmem:[%s672 + $0x14] sm:$0x1] %v809
        %v811 = vld [vmem:[%s672 + $0x18] sm:$0xf]
        %v812 = vsel %vm611, %v758, %v811
        %813 = vst [vmem:[%s672 + $0x18] sm:$0xf] %v812
        %v814 = vld [vmem:[%s672 + $0x1c] sm:$0x1]
        %v815 = vsel %vm491, %v760, %v814
        %816 = vst [vmem:[%s672 + $0x1c] sm:$0x1] %v815
        %v817 = vld [vmem:[%s672 + $0x30] sm:$0xf]
        %v818 = vsel %vm611, %v762, %v817
        %819 = vst [vmem:[%s672 + $0x30] sm:$0xf] %v818
        %v820 = vld [vmem:[%s672 + $0x34] sm:$0x1]
        %v821 = vsel %vm491, %v764, %v820
        %822 = vst [vmem:[%s672 + $0x34] sm:$0x1] %v821
        %v823 = vld [vmem:[%s672 + $0x38] sm:$0xf]
        %v824 = vsel %vm611, %v766, %v823
        %825 = vst [vmem:[%s672 + $0x38] sm:$0xf] %v824
        %v826 = vld [vmem:[%s672 + $0x3c] sm:$0x1]
        %v827 = vsel %vm491, %v768, %v826
        %828 = vst [vmem:[%s672 + $0x3c] sm:$0x1] %v827
        %v829 = vld [vmem:[%s672 + $0x40] sm:$0xf]
        %v830 = vsel %vm611, %v770, %v829
        %831 = vst [vmem:[%s672 + $0x40] sm:$0xf] %v830
        %v832 = vld [vmem:[%s672 + $0x44] sm:$0x1]
        %v833 = vsel %vm491, %v772, %v832
        %834 = vst [vmem:[%s672 + $0x44] sm:$0x1] %v833
        %v835 = vld [vmem:[%s672 + $0x48] sm:$0xf]
        %v836 = vsel %vm611, %v774, %v835
        %837 = vst [vmem:[%s672 + $0x48] sm:$0xf] %v836
        %v838 = vld [vmem:[%s672 + $0x4c] sm:$0x1]
        %v839 = vsel %vm491, %v776, %v838
        %840 = vst [vmem:[%s672 + $0x4c] sm:$0x1] %v839
        %v841 = vld [vmem:[%s426] sm:$0xff]
        %v842 = vld [vmem:[%s426 + $0x8] sm:$0xff]
        %v843 = vpack.c.bf16 %v841, %v841
        %v844 = vpack.c.bf16 %v842, %v842
        %847 = vrot.lane.b32.xlu0 %v843, 64
        %v848 = vpop.permute.xlu0 %847
        %849 = vrot.lane.b32.xlu0 %v844, 64
        %v850 = vpop.permute.xlu0 %849
        %s853 = scalar_lea.vmem [#allocation2], 40
        %854 = vst.msk [vmem:[%s853] sm:$0xf] %vm578, %v848
        %855 = vst.msk [vmem:[%s853 + $0x30] sm:$0xf] %vm578, %v850
        %v857 = vshrl.u32 %v843, 16
        %v859 = vrot.slane %v857, 7
        %v860 = vshll.u32 %v843, 16
        %v862 = vor.u32 %v859, %v860
        %v863 = vrot.slane %v859, 4
        %v865 = vshrl.u32 %v844, 16
        %v867 = vrot.slane %v865, 7
        %v868 = vshll.u32 %v844, 16
        %v870 = vor.u32 %v867, %v868
        %v871 = vrot.slane %v867, 4
        %872 = vrot.lane.b32.xlu0 %v862, 64
        %v873 = vpop.permute.xlu0 %872
        %874 = vrot.lane.b32.xlu0 %v863, 64
        %v875 = vpop.permute.xlu0 %874
        %876 = vrot.lane.b32.xlu0 %v870, 64
        %v877 = vpop.permute.xlu0 %876
        %878 = vrot.lane.b32.xlu0 %v871, 64
        %v879 = vpop.permute.xlu0 %878
        %v884 = vld [vmem:[%s853] sm:$0xf]
        %v885 = vsel %vm611, %v873, %v884
        %886 = vst [vmem:[%s853] sm:$0xf] %v885
        %v887 = vld [vmem:[%s853 + $0x4] sm:$0x1]
        %v888 = vsel %vm491, %v875, %v887
        %889 = vst [vmem:[%s853 + $0x4] sm:$0x1] %v888
        %v890 = vld [vmem:[%s853 + $0x30] sm:$0xf]
        %v891 = vsel %vm611, %v877, %v890
        %892 = vst [vmem:[%s853 + $0x30] sm:$0xf] %v891
        %v893 = vld [vmem:[%s853 + $0x34] sm:$0x1]
        %v894 = vsel %vm491, %v879, %v893
        %895 = vst [vmem:[%s853 + $0x34] sm:$0x1] %v894
        %p896 = scmp.eq.s32.totalorder %s27, 0
        // Predicated region
        $region69: #{tpu_custom_call.1} parent=43 // pred_check
          %p897 = pneg %p896
        $region70: #{tpu_custom_call.1} parent=43 // pred_check_branch
          %899 = sbr.rel (%p897) target = $region72
        $region71: #{tpu_custom_call.1} parent=43 // pred_region
          %900 = vst [vmem:[#allocation2] sm:$0xf] 0
          %vm901 = vcmask 1040384
          %vm902 = vmand %vm901, %vm490
          %v903 = vld [vmem:[#allocation2 + $0x4] sm:$0x1]
          %v904 = vsel %vm902, 0, %v903
          %905 = vst [vmem:[#allocation2 + $0x4] sm:$0x1] %v904
          %906 = vst [vmem:[#allocation2 + $0x30] sm:$0xf] 0
          %v907 = vld [vmem:[#allocation2 + $0x34] sm:$0x1]
          %v908 = vsel %vm902, 0, %v907
          %909 = vst [vmem:[#allocation2 + $0x34] sm:$0x1] %v908
        $region72: #{tpu_custom_call.1} parent=43 // pred_fallthru
          _
        %p910 = scmp.eq.s32.totalorder %s27, 3
        // Predicated region
        $region73: #{tpu_custom_call.1} parent=43 // pred_check
          %p911 = pneg %p910
        $region74: #{tpu_custom_call.1} parent=43 // pred_check_branch
          %913 = sbr.rel (%p911) target = $region76
        $region75: #{tpu_custom_call.1} parent=43 // pred_region
          %914 = vst [vmem:[%s853] sm:$0xf] 0
          %vm915 = vcmask 1040384
          %vm916 = vmand %vm915, %vm490
          %v917 = vld [vmem:[%s853 + $0x4] sm:$0x1]
          %v918 = vsel %vm916, 0, %v917
          %919 = vst [vmem:[%s853 + $0x4] sm:$0x1] %v918
          %920 = vst [vmem:[%s853 + $0x30] sm:$0xf] 0
          %v921 = vld [vmem:[%s853 + $0x34] sm:$0x1]
          %v922 = vsel %vm916, 0, %v921
          %923 = vst [vmem:[%s853 + $0x34] sm:$0x1] %v922
        $region76: #{tpu_custom_call.1} parent=43 // pred_fallthru
          _
        %v924 = vld [vmem:[#allocation2] sm:$0xf]
        %v925 = vld [vmem:[#allocation2 + $0x8] sm:$0xf]
        %v926 = vld [vmem:[#allocation2 + $0x10] sm:$0xf]
        %v927 = vld [vmem:[#allocation2 + $0x18] sm:$0xf]
        %v928 = vld [vmem:[#allocation2 + $0x30] sm:$0xf]
        %v929 = vld [vmem:[#allocation2 + $0x38] sm:$0xf]
        %v930 = vld [vmem:[#allocation2 + $0x40] sm:$0xf]
        %v931 = vld [vmem:[#allocation2 + $0x48] sm:$0xf]
        %932 = vst [vmem:[#allocation3] sm:$0xf] %v924
        %933 = vst [vmem:[#allocation3 + $0x18] sm:$0xf] %v925
        %934 = vst [vmem:[#allocation3 + $0x30] sm:$0xf] %v926
        %935 = vst [vmem:[#allocation3 + $0x48] sm:$0xf] %v927
        %936 = vst [vmem:[#allocation3 + $0x60] sm:$0xf] %v928
        %937 = vst [vmem:[#allocation3 + $0x78] sm:$0xf] %v929
        %938 = vst [vmem:[#allocation3 + $0x90] sm:$0xf] %v930
        %939 = vst [vmem:[#allocation3 + $0xa8] sm:$0xf] %v931
        %v940 = vld [vmem:[#allocation2] sm:$0xf]
        %v941 = vld [vmem:[#allocation2 + $0x4] sm:$0x1]
        %v942 = vld [vmem:[#allocation2 + $0x8] sm:$0xf]
        %v943 = vld [vmem:[#allocation2 + $0xc] sm:$0x1]
        %v944 = vld [vmem:[#allocation2 + $0x10] sm:$0xf]
        %v945 = vld [vmem:[#allocation2 + $0x14] sm:$0x1]
        %v946 = vld [vmem:[#allocation2 + $0x18] sm:$0xf]
        %v947 = vld [vmem:[#allocation2 + $0x1c] sm:$0x1]
        %v948 = vld [vmem:[#allocation2 + $0x30] sm:$0xf]
        %v949 = vld [vmem:[#allocation2 + $0x34] sm:$0x1]
        %v950 = vld [vmem:[#allocation2 + $0x38] sm:$0xf]
        %v951 = vld [vmem:[#allocation2 + $0x3c] sm:$0x1]
        %v952 = vld [vmem:[#allocation2 + $0x40] sm:$0xf]
        %v953 = vld [vmem:[#allocation2 + $0x44] sm:$0x1]
        %v954 = vld [vmem:[#allocation2 + $0x48] sm:$0xf]
        %v955 = vld [vmem:[#allocation2 + $0x4c] sm:$0x1]
        %vm956 = vsmask.f32 3328
        %vm957 = vsmask.f32 7440
        %vm958 = vmor %vm956, %vm957
        %v960 = vshrl.u32 %v940, 16
        %v962 = vrot.slane %v960, 4
        %v963 = vshll.u32 %v940, 16
        %v965 = vrot.slane %v963, 5
        %v966 = vor.u32 %v962, %v965
        %v967 = vrot.slane %v966, 4
        %v969 = vshll.u32 %v941, 16
        %v971 = vrot.slane %v969, 5
        %v972 = vsel %vm958, %v967, %v971
        %v974 = vshrl.u32 %v942, 16
        %v976 = vrot.slane %v974, 4
        %v977 = vshll.u32 %v942, 16
        %v979 = vrot.slane %v977, 5
        %v980 = vor.u32 %v976, %v979
        %v981 = vrot.slane %v980, 4
        %v983 = vshll.u32 %v943, 16
        %v985 = vrot.slane %v983, 5
        %v986 = vsel %vm958, %v981, %v985
        %v988 = vshrl.u32 %v944, 16
        %v990 = vrot.slane %v988, 4
        %v991 = vshll.u32 %v944, 16
        %v993 = vrot.slane %v991, 5
        %v994 = vor.u32 %v990, %v993
        %v995 = vrot.slane %v994, 4
        %v997 = vshll.u32 %v945, 16
        %v999 = vrot.slane %v997, 5
        %v1000 = vsel %vm958, %v995, %v999
        %v1002 = vshrl.u32 %v946, 16
        %v1004 = vrot.slane %v1002, 4
        %v1005 = vshll.u32 %v946, 16
        %v1007 = vrot.slane %v1005, 5
        %v1008 = vor.u32 %v1004, %v1007
        %v1009 = vrot.slane %v1008, 4
        %v1011 = vshll.u32 %v947, 16
        %v1013 = vrot.slane %v1011, 5
        %v1014 = vsel %vm958, %v1009, %v1013
        %v1016 = vshrl.u32 %v948, 16
        %v1018 = vrot.slane %v1016, 4
        %v1019 = vshll.u32 %v948, 16
        %v1021 = vrot.slane %v1019, 5
        %v1022 = vor.u32 %v1018, %v1021
        %v1023 = vrot.slane %v1022, 4
        %v1025 = vshll.u32 %v949, 16
        %v1027 = vrot.slane %v1025, 5
        %v1028 = vsel %vm958, %v1023, %v1027
        %v1030 = vshrl.u32 %v950, 16
        %v1032 = vrot.slane %v1030, 4
        %v1033 = vshll.u32 %v950, 16
        %v1035 = vrot.slane %v1033, 5
        %v1036 = vor.u32 %v1032, %v1035
        %v1037 = vrot.slane %v1036, 4
        %v1039 = vshll.u32 %v951, 16
        %v1041 = vrot.slane %v1039, 5
        %v1042 = vsel %vm958, %v1037, %v1041
        %v1044 = vshrl.u32 %v952, 16
        %v1046 = vrot.slane %v1044, 4
        %v1047 = vshll.u32 %v952, 16
        %v1049 = vrot.slane %v1047, 5
        %v1050 = vor.u32 %v1046, %v1049
        %v1051 = vrot.slane %v1050, 4
        %v1053 = vshll.u32 %v953, 16
        %v1055 = vrot.slane %v1053, 5
        %v1056 = vsel %vm958, %v1051, %v1055
        %v1058 = vshrl.u32 %v954, 16
        %v1060 = vrot.slane %v1058, 4
        %v1061 = vshll.u32 %v954, 16
        %v1063 = vrot.slane %v1061, 5
        %v1064 = vor.u32 %v1060, %v1063
        %v1065 = vrot.slane %v1064, 4
        %v1067 = vshll.u32 %v955, 16
        %v1069 = vrot.slane %v1067, 5
        %v1070 = vsel %vm958, %v1065, %v1069
        %1079 = vst [vmem:[#allocation3 + $0x4] sm:$0xf] %v972
        %1080 = vst [vmem:[#allocation3 + $0x1c] sm:$0xf] %v986
        %1081 = vst [vmem:[#allocation3 + $0x34] sm:$0xf] %v1000
        %1082 = vst [vmem:[#allocation3 + $0x4c] sm:$0xf] %v1014
        %1083 = vst [vmem:[#allocation3 + $0x64] sm:$0xf] %v1028
        %1084 = vst [vmem:[#allocation3 + $0x7c] sm:$0xf] %v1042
        %1085 = vst [vmem:[#allocation3 + $0x94] sm:$0xf] %v1056
        %1086 = vst [vmem:[#allocation3 + $0xac] sm:$0xf] %v1070
        %v1087 = vld [vmem:[%s672] sm:$0xf]
        %v1088 = vld [vmem:[%s672 + $0x8] sm:$0xf]
        %v1089 = vld [vmem:[%s672 + $0x10] sm:$0xf]
        %v1090 = vld [vmem:[%s672 + $0x18] sm:$0xf]
        %v1091 = vld [vmem:[%s672 + $0x30] sm:$0xf]
        %v1092 = vld [vmem:[%s672 + $0x38] sm:$0xf]
        %v1093 = vld [vmem:[%s672 + $0x40] sm:$0xf]
        %v1094 = vld [vmem:[%s672 + $0x48] sm:$0xf]
        %1095 = vst [vmem:[#allocation3 + $0x8] sm:$0xf] %v1087
        %1096 = vst [vmem:[#allocation3 + $0x20] sm:$0xf] %v1088
        %1097 = vst [vmem:[#allocation3 + $0x38] sm:$0xf] %v1089
        %1098 = vst [vmem:[#allocation3 + $0x50] sm:$0xf] %v1090
        %1099 = vst [vmem:[#allocation3 + $0x68] sm:$0xf] %v1091
        %1100 = vst [vmem:[#allocation3 + $0x80] sm:$0xf] %v1092
        %1101 = vst [vmem:[#allocation3 + $0x98] sm:$0xf] %v1093
        %1102 = vst [vmem:[#allocation3 + $0xb0] sm:$0xf] %v1094
        %v1103 = vld [vmem:[%s672] sm:$0xf]
        %v1104 = vld [vmem:[%s672 + $0x4] sm:$0x1]
        %v1105 = vld [vmem:[%s672 + $0x8] sm:$0xf]
        %v1106 = vld [vmem:[%s672 + $0xc] sm:$0x1]
        %v1107 = vld [vmem:[%s672 + $0x10] sm:$0xf]
        %v1108 = vld [vmem:[%s672 + $0x14] sm:$0x1]
        %v1109 = vld [vmem:[%s672 + $0x18] sm:$0xf]
        %v1110 = vld [vmem:[%s672 + $0x1c] sm:$0x1]
        %v1111 = vld [vmem:[%s672 + $0x30] sm:$0xf]
        %v1112 = vld [vmem:[%s672 + $0x34] sm:$0x1]
        %v1113 = vld [vmem:[%s672 + $0x38] sm:$0xf]
        %v1114 = vld [vmem:[%s672 + $0x3c] sm:$0x1]
        %v1115 = vld [vmem:[%s672 + $0x40] sm:$0xf]
        %v1116 = vld [vmem:[%s672 + $0x44] sm:$0x1]
        %v1117 = vld [vmem:[%s672 + $0x48] sm:$0xf]
        %v1118 = vld [vmem:[%s672 + $0x4c] sm:$0x1]
        %v1120 = vshrl.u32 %v1103, 16
        %v1122 = vrot.slane %v1120, 4
        %v1123 = vshll.u32 %v1103, 16
        %v1125 = vrot.slane %v1123, 5
        %v1126 = vor.u32 %v1122, %v1125
        %v1127 = vrot.slane %v1126, 4
        %v1129 = vshll.u32 %v1104, 16
        %v1131 = vrot.slane %v1129, 5
        %v1132 = vsel %vm958, %v1127, %v1131
        %v1134 = vshrl.u32 %v1105, 16
        %v1136 = vrot.slane %v1134, 4
        %v1137 = vshll.u32 %v1105, 16
        %v1139 = vrot.slane %v1137, 5
        %v1140 = vor.u32 %v1136, %v1139
        %v1141 = vrot.slane %v1140, 4
        %v1143 = vshll.u32 %v1106, 16
        %v1145 = vrot.slane %v1143, 5
        %v1146 = vsel %vm958, %v1141, %v1145
        %v1148 = vshrl.u32 %v1107, 16
        %v1150 = vrot.slane %v1148, 4
        %v1151 = vshll.u32 %v1107, 16
        %v1153 = vrot.slane %v1151, 5
        %v1154 = vor.u32 %v1150, %v1153
        %v1155 = vrot.slane %v1154, 4
        %v1157 = vshll.u32 %v1108, 16
        %v1159 = vrot.slane %v1157, 5
        %v1160 = vsel %vm958, %v1155, %v1159
        %v1162 = vshrl.u32 %v1109, 16
        %v1164 = vrot.slane %v1162, 4
        %v1165 = vshll.u32 %v1109, 16
        %v1167 = vrot.slane %v1165, 5
        %v1168 = vor.u32 %v1164, %v1167
        %v1169 = vrot.slane %v1168, 4
        %v1171 = vshll.u32 %v1110, 16
        %v1173 = vrot.slane %v1171, 5
        %v1174 = vsel %vm958, %v1169, %v1173
        %v1176 = vshrl.u32 %v1111, 16
        %v1178 = vrot.slane %v1176, 4
        %v1179 = vshll.u32 %v1111, 16
        %v1181 = vrot.slane %v1179, 5
        %v1182 = vor.u32 %v1178, %v1181
        %v1183 = vrot.slane %v1182, 4
        %v1185 = vshll.u32 %v1112, 16
        %v1187 = vrot.slane %v1185, 5
        %v1188 = vsel %vm958, %v1183, %v1187
        %v1190 = vshrl.u32 %v1113, 16
        %v1192 = vrot.slane %v1190, 4
        %v1193 = vshll.u32 %v1113, 16
        %v1195 = vrot.slane %v1193, 5
        %v1196 = vor.u32 %v1192, %v1195
        %v1197 = vrot.slane %v1196, 4
        %v1199 = vshll.u32 %v1114, 16
        %v1201 = vrot.slane %v1199, 5
        %v1202 = vsel %vm958, %v1197, %v1201
        %v1204 = vshrl.u32 %v1115, 16
        %v1206 = vrot.slane %v1204, 4
        %v1207 = vshll.u32 %v1115, 16
        %v1209 = vrot.slane %v1207, 5
        %v1210 = vor.u32 %v1206, %v1209
        %v1211 = vrot.slane %v1210, 4
        %v1213 = vshll.u32 %v1116, 16
        %v1215 = vrot.slane %v1213, 5
        %v1216 = vsel %vm958, %v1211, %v1215
        %v1218 = vshrl.u32 %v1117, 16
        %v1220 = vrot.slane %v1218, 4
        %v1221 = vshll.u32 %v1117, 16
        %v1223 = vrot.slane %v1221, 5
        %v1224 = vor.u32 %v1220, %v1223
        %v1225 = vrot.slane %v1224, 4
        %v1227 = vshll.u32 %v1118, 16
        %v1229 = vrot.slane %v1227, 5
        %v1230 = vsel %vm958, %v1225, %v1229
        %1239 = vst [vmem:[#allocation3 + $0xc] sm:$0xf] %v1132
        %1240 = vst [vmem:[#allocation3 + $0x24] sm:$0xf] %v1146
        %1241 = vst [vmem:[#allocation3 + $0x3c] sm:$0xf] %v1160
        %1242 = vst [vmem:[#allocation3 + $0x54] sm:$0xf] %v1174
        %1243 = vst [vmem:[#allocation3 + $0x6c] sm:$0xf] %v1188
        %1244 = vst [vmem:[#allocation3 + $0x84] sm:$0xf] %v1202
        %1245 = vst [vmem:[#allocation3 + $0x9c] sm:$0xf] %v1216
        %1246 = vst [vmem:[#allocation3 + $0xb4] sm:$0xf] %v1230
        %s1247 = scalar_lea.vmem [#allocation2], 16
        %v1248 = vld [vmem:[%s1247] sm:$0xf]
        %v1249 = vld [vmem:[%s1247 + $0x8] sm:$0xf]
        %v1250 = vld [vmem:[%s1247 + $0x10] sm:$0xf]
        %v1251 = vld [vmem:[%s1247 + $0x18] sm:$0xf]
        %v1252 = vld [vmem:[%s1247 + $0x30] sm:$0xf]
        %v1253 = vld [vmem:[%s1247 + $0x38] sm:$0xf]
        %v1254 = vld [vmem:[%s1247 + $0x40] sm:$0xf]
        %v1255 = vld [vmem:[%s1247 + $0x48] sm:$0xf]
        %1256 = vst [vmem:[#allocation3 + $0x10] sm:$0xf] %v1248
        %1257 = vst [vmem:[#allocation3 + $0x28] sm:$0xf] %v1249
        %1258 = vst [vmem:[#allocation3 + $0x40] sm:$0xf] %v1250
        %1259 = vst [vmem:[#allocation3 + $0x58] sm:$0xf] %v1251
        %1260 = vst [vmem:[#allocation3 + $0x70] sm:$0xf] %v1252
        %1261 = vst [vmem:[#allocation3 + $0x88] sm:$0xf] %v1253
        %1262 = vst [vmem:[#allocation3 + $0xa0] sm:$0xf] %v1254
        %1263 = vst [vmem:[#allocation3 + $0xb8] sm:$0xf] %v1255
        %v1264 = vld [vmem:[%s1247] sm:$0xf]
        %v1265 = vld [vmem:[%s1247 + $0x4] sm:$0x1]
        %v1266 = vld [vmem:[%s1247 + $0x8] sm:$0xf]
        %v1267 = vld [vmem:[%s1247 + $0xc] sm:$0x1]
        %v1268 = vld [vmem:[%s1247 + $0x10] sm:$0xf]
        %v1269 = vld [vmem:[%s1247 + $0x14] sm:$0x1]
        %v1270 = vld [vmem:[%s1247 + $0x18] sm:$0xf]
        %v1271 = vld [vmem:[%s1247 + $0x1c] sm:$0x1]
        %v1272 = vld [vmem:[%s1247 + $0x30] sm:$0xf]
        %v1273 = vld [vmem:[%s1247 + $0x34] sm:$0x1]
        %v1274 = vld [vmem:[%s1247 + $0x38] sm:$0xf]
        %v1275 = vld [vmem:[%s1247 + $0x3c] sm:$0x1]
        %v1276 = vld [vmem:[%s1247 + $0x40] sm:$0xf]
        %v1277 = vld [vmem:[%s1247 + $0x44] sm:$0x1]
        %v1278 = vld [vmem:[%s1247 + $0x48] sm:$0xf]
        %v1279 = vld [vmem:[%s1247 + $0x4c] sm:$0x1]
        %v1281 = vshrl.u32 %v1264, 16
        %v1283 = vrot.slane %v1281, 4
        %v1284 = vshll.u32 %v1264, 16
        %v1286 = vrot.slane %v1284, 5
        %v1287 = vor.u32 %v1283, %v1286
        %v1288 = vrot.slane %v1287, 4
        %v1290 = vshll.u32 %v1265, 16
        %v1292 = vrot.slane %v1290, 5
        %v1293 = vsel %vm958, %v1288, %v1292
        %v1295 = vshrl.u32 %v1266, 16
        %v1297 = vrot.slane %v1295, 4
        %v1298 = vshll.u32 %v1266, 16
        %v1300 = vrot.slane %v1298, 5
        %v1301 = vor.u32 %v1297, %v1300
        %v1302 = vrot.slane %v1301, 4
        %v1304 = vshll.u32 %v1267, 16
        %v1306 = vrot.slane %v1304, 5
        %v1307 = vsel %vm958, %v1302, %v1306
        %v1309 = vshrl.u32 %v1268, 16
        %v1311 = vrot.slane %v1309, 4
        %v1312 = vshll.u32 %v1268, 16
        %v1314 = vrot.slane %v1312, 5
        %v1315 = vor.u32 %v1311, %v1314
        %v1316 = vrot.slane %v1315, 4
        %v1318 = vshll.u32 %v1269, 16
        %v1320 = vrot.slane %v1318, 5
        %v1321 = vsel %vm958, %v1316, %v1320
        %v1323 = vshrl.u32 %v1270, 16
        %v1325 = vrot.slane %v1323, 4
        %v1326 = vshll.u32 %v1270, 16
        %v1328 = vrot.slane %v1326, 5
        %v1329 = vor.u32 %v1325, %v1328
        %v1330 = vrot.slane %v1329, 4
        %v1332 = vshll.u32 %v1271, 16
        %v1334 = vrot.slane %v1332, 5
        %v1335 = vsel %vm958, %v1330, %v1334
        %v1337 = vshrl.u32 %v1272, 16
        %v1339 = vrot.slane %v1337, 4
        %v1340 = vshll.u32 %v1272, 16
        %v1342 = vrot.slane %v1340, 5
        %v1343 = vor.u32 %v1339, %v1342
        %v1344 = vrot.slane %v1343, 4
        %v1346 = vshll.u32 %v1273, 16
        %v1348 = vrot.slane %v1346, 5
        %v1349 = vsel %vm958, %v1344, %v1348
        %v1351 = vshrl.u32 %v1274, 16
        %v1353 = vrot.slane %v1351, 4
        %v1354 = vshll.u32 %v1274, 16
        %v1356 = vrot.slane %v1354, 5
        %v1357 = vor.u32 %v1353, %v1356
        %v1358 = vrot.slane %v1357, 4
        %v1360 = vshll.u32 %v1275, 16
        %v1362 = vrot.slane %v1360, 5
        %v1363 = vsel %vm958, %v1358, %v1362
        %v1365 = vshrl.u32 %v1276, 16
        %v1367 = vrot.slane %v1365, 4
        %v1368 = vshll.u32 %v1276, 16
        %v1370 = vrot.slane %v1368, 5
        %v1371 = vor.u32 %v1367, %v1370
        %v1372 = vrot.slane %v1371, 4
        %v1374 = vshll.u32 %v1277, 16
        %v1376 = vrot.slane %v1374, 5
        %v1377 = vsel %vm958, %v1372, %v1376
        %v1379 = vshrl.u32 %v1278, 16
        %v1381 = vrot.slane %v1379, 4
        %v1382 = vshll.u32 %v1278, 16
        %v1384 = vrot.slane %v1382, 5
        %v1385 = vor.u32 %v1381, %v1384
        %v1386 = vrot.slane %v1385, 4
        %v1388 = vshll.u32 %v1279, 16
        %v1390 = vrot.slane %v1388, 5
        %v1391 = vsel %vm958, %v1386, %v1390
        %1400 = vst [vmem:[#allocation3 + $0x14] sm:$0xf] %v1293
        %1401 = vst [vmem:[#allocation3 + $0x2c] sm:$0xf] %v1307
        %1402 = vst [vmem:[#allocation3 + $0x44] sm:$0xf] %v1321
        %1403 = vst [vmem:[#allocation3 + $0x5c] sm:$0xf] %v1335
        %1404 = vst [vmem:[#allocation3 + $0x74] sm:$0xf] %v1349
        %1405 = vst [vmem:[#allocation3 + $0x8c] sm:$0xf] %v1363
        %1406 = vst [vmem:[#allocation3 + $0xa4] sm:$0xf] %v1377
        %1407 = vst [vmem:[#allocation3 + $0xbc] sm:$0xf] %v1391
        %v1408 = vld [vmem:[#allocation3] sm:$0xff]
        %v1409 = vld [vmem:[#allocation3 + $0x8] sm:$0xff]
        %v1410 = vld [vmem:[#allocation3 + $0x10] sm:$0xff]
        %v1411 = vld [vmem:[#allocation3 + $0x18] sm:$0xff]
        %v1412 = vld [vmem:[#allocation3 + $0x20] sm:$0xff]
        %v1413 = vld [vmem:[#allocation3 + $0x28] sm:$0xff]
        %v1414 = vld [vmem:[#allocation3 + $0x30] sm:$0xff]
        %v1415 = vld [vmem:[#allocation3 + $0x38] sm:$0xff]
        %v1416 = vld [vmem:[#allocation3 + $0x40] sm:$0xff]
        %v1417 = vld [vmem:[#allocation3 + $0x48] sm:$0xff]
        %v1418 = vld [vmem:[#allocation3 + $0x50] sm:$0xff]
        %v1419 = vld [vmem:[#allocation3 + $0x58] sm:$0xff]
        %v1420 = vld [vmem:[#allocation3 + $0x60] sm:$0xff]
        %v1421 = vld [vmem:[#allocation3 + $0x68] sm:$0xff]
        %v1422 = vld [vmem:[#allocation3 + $0x70] sm:$0xff]
        %v1423 = vld [vmem:[#allocation3 + $0x78] sm:$0xff]
        %v1424 = vld [vmem:[#allocation3 + $0x80] sm:$0xff]
        %v1425 = vld [vmem:[#allocation3 + $0x88] sm:$0xff]
        %v1426 = vld [vmem:[#allocation3 + $0x90] sm:$0xff]
        %v1427 = vld [vmem:[#allocation3 + $0x98] sm:$0xff]
        %v1428 = vld [vmem:[#allocation3 + $0xa0] sm:$0xff]
        %v1429 = vld [vmem:[#allocation3 + $0xa8] sm:$0xff]
        %v1430 = vld [vmem:[#allocation3 + $0xb0] sm:$0xff]
        %v1431 = vld [vmem:[#allocation3 + $0xb8] sm:$0xff]
        %v1432 = vld [vmem:[#allocation12] sm:$0xf]
        %v1433 = vld [vmem:[#allocation12 + $0x4] sm:$0xf]
        %v1434 = vld [vmem:[#allocation12 + $0x8] sm:$0xf]
        %v1435 = vld [vmem:[#allocation12 + $0xc] sm:$0xf]
        %v1436 = vld [vmem:[#allocation12 + $0x10] sm:$0xf]
        %v1437 = vld [vmem:[#allocation12 + $0x14] sm:$0xf]
        %v1438 = vld [vmem:[#allocation12 + $0x18] sm:$0xf]
        %v1439 = vld [vmem:[#allocation12 + $0x1c] sm:$0xf]
        %v1440 = vld [vmem:[#allocation12 + $0x20] sm:$0xf]
        %v1441 = vld [vmem:[#allocation12 + $0x24] sm:$0xf]
        %v1442 = vld [vmem:[#allocation12 + $0x28] sm:$0xf]
        %v1443 = vld [vmem:[#allocation12 + $0x2c] sm:$0xf]
        %v1444 = vld [vmem:[#allocation12 + $0x30] sm:$0xf]
        %v1445 = vld [vmem:[#allocation12 + $0x34] sm:$0xf]
        %v1446 = vld [vmem:[#allocation12 + $0x38] sm:$0xf]
        %v1447 = vld [vmem:[#allocation12 + $0x3c] sm:$0xf]
        %v1448 = vld [vmem:[#allocation12 + $0x40] sm:$0xf]
        %v1449 = vld [vmem:[#allocation12 + $0x44] sm:$0xf]
        %v1450 = vld [vmem:[#allocation12 + $0x48] sm:$0xf]
        %v1451 = vld [vmem:[#allocation12 + $0x4c] sm:$0xf]
        %v1452 = vld [vmem:[#allocation12 + $0x50] sm:$0xf]
        %v1453 = vld [vmem:[#allocation12 + $0x54] sm:$0xf]
        %v1454 = vld [vmem:[#allocation12 + $0x58] sm:$0xf]
        %v1455 = vld [vmem:[#allocation12 + $0x5c] sm:$0xf]
        %v1456 = vld [vmem:[#allocation12 + $0x60] sm:$0xf]
        %v1457 = vld [vmem:[#allocation12 + $0x64] sm:$0xf]
        %v1458 = vld [vmem:[#allocation12 + $0x68] sm:$0xf]
        %v1459 = vld [vmem:[#allocation12 + $0x6c] sm:$0xf]
        %v1460 = vld [vmem:[#allocation12 + $0x70] sm:$0xf]
        %v1461 = vld [vmem:[#allocation12 + $0x74] sm:$0xf]
        %v1462 = vld [vmem:[#allocation12 + $0x78] sm:$0xf]
        %v1463 = vld [vmem:[#allocation12 + $0x7c] sm:$0xf]
        %v1464 = vld [vmem:[#allocation12 + $0x80] sm:$0xf]
        %v1465 = vld [vmem:[#allocation12 + $0x84] sm:$0xf]
        %v1466 = vld [vmem:[#allocation12 + $0x88] sm:$0xf]
        %v1467 = vld [vmem:[#allocation12 + $0x8c] sm:$0xf]
        %v1468 = vld [vmem:[#allocation12 + $0x90] sm:$0xf]
        %v1469 = vld [vmem:[#allocation12 + $0x94] sm:$0xf]
        %v1470 = vld [vmem:[#allocation12 + $0x98] sm:$0xf]
        %v1471 = vld [vmem:[#allocation12 + $0x9c] sm:$0xf]
        %v1472 = vld [vmem:[#allocation12 + $0xa0] sm:$0xf]
        %v1473 = vld [vmem:[#allocation12 + $0xa4] sm:$0xf]
        %v1474 = vld [vmem:[#allocation12 + $0xa8] sm:$0xf]
        %v1475 = vld [vmem:[#allocation12 + $0xac] sm:$0xf]
        %v1476 = vld [vmem:[#allocation12 + $0xb0] sm:$0xf]
        %v1477 = vld [vmem:[#allocation12 + $0xb4] sm:$0xf]
        %v1478 = vld [vmem:[#allocation12 + $0xb8] sm:$0xf]
        %v1479 = vld [vmem:[#allocation12 + $0xbc] sm:$0xf]
        %v1480 = vld [vmem:[#allocation12 + $0xc0] sm:$0xf]
        %v1481 = vld [vmem:[#allocation12 + $0xc4] sm:$0xf]
        %v1482 = vld [vmem:[#allocation12 + $0xc8] sm:$0xf]
        %v1483 = vld [vmem:[#allocation12 + $0xcc] sm:$0xf]
        %v1484 = vld [vmem:[#allocation12 + $0xd0] sm:$0xf]
        %v1485 = vld [vmem:[#allocation12 + $0xd4] sm:$0xf]
        %v1486 = vld [vmem:[#allocation12 + $0xd8] sm:$0xf]
        %v1487 = vld [vmem:[#allocation12 + $0xdc] sm:$0xf]
        %v1488 = vld [vmem:[#allocation12 + $0xe0] sm:$0xf]
        %v1489 = vld [vmem:[#allocation12 + $0xe4] sm:$0xf]
        %v1490 = vld [vmem:[#allocation12 + $0xe8] sm:$0xf]
        %v1491 = vld [vmem:[#allocation12 + $0xec] sm:$0xf]
        %v1492 = vld [vmem:[#allocation12 + $0xf0] sm:$0xf]
        %v1493 = vld [vmem:[#allocation12 + $0xf4] sm:$0xf]
        %v1494 = vld [vmem:[#allocation12 + $0xf8] sm:$0xf]
        %v1495 = vld [vmem:[#allocation12 + $0xfc] sm:$0xf]
        %v1496 = vld [vmem:[#allocation12 + $0x100] sm:$0xf]
        %v1497 = vld [vmem:[#allocation12 + $0x104] sm:$0xf]
        %v1498 = vld [vmem:[#allocation12 + $0x108] sm:$0xf]
        %v1499 = vld [vmem:[#allocation12 + $0x10c] sm:$0xf]
        %v1500 = vld [vmem:[#allocation12 + $0x110] sm:$0xf]
        %v1501 = vld [vmem:[#allocation12 + $0x114] sm:$0xf]
        %v1502 = vld [vmem:[#allocation12 + $0x118] sm:$0xf]
        %v1503 = vld [vmem:[#allocation12 + $0x11c] sm:$0xf]
        %v1504 = vld [vmem:[#allocation12 + $0x120] sm:$0xf]
        %v1505 = vld [vmem:[#allocation12 + $0x124] sm:$0xf]
        %v1506 = vld [vmem:[#allocation12 + $0x128] sm:$0xf]
        %v1507 = vld [vmem:[#allocation12 + $0x12c] sm:$0xf]
        %v1508 = vld [vmem:[#allocation12 + $0x130] sm:$0xf]
        %v1509 = vld [vmem:[#allocation12 + $0x134] sm:$0xf]
        %v1510 = vld [vmem:[#allocation12 + $0x138] sm:$0xf]
        %v1511 = vld [vmem:[#allocation12 + $0x13c] sm:$0xf]
        %v1512 = vld [vmem:[#allocation12 + $0x140] sm:$0xf]
        %v1513 = vld [vmem:[#allocation12 + $0x144] sm:$0xf]
        %v1514 = vld [vmem:[#allocation12 + $0x148] sm:$0xf]
        %v1515 = vld [vmem:[#allocation12 + $0x14c] sm:$0xf]
        %v1516 = vld [vmem:[#allocation12 + $0x150] sm:$0xf]
        %v1517 = vld [vmem:[#allocation12 + $0x154] sm:$0xf]
        %v1518 = vld [vmem:[#allocation12 + $0x158] sm:$0xf]
        %v1519 = vld [vmem:[#allocation12 + $0x15c] sm:$0xf]
        %v1520 = vld [vmem:[#allocation12 + $0x160] sm:$0xf]
        %v1521 = vld [vmem:[#allocation12 + $0x164] sm:$0xf]
        %v1522 = vld [vmem:[#allocation12 + $0x168] sm:$0xf]
        %v1523 = vld [vmem:[#allocation12 + $0x16c] sm:$0xf]
        %v1524 = vld [vmem:[#allocation12 + $0x170] sm:$0xf]
        %v1525 = vld [vmem:[#allocation12 + $0x174] sm:$0xf]
        %v1526 = vld [vmem:[#allocation12 + $0x178] sm:$0xf]
        %v1527 = vld [vmem:[#allocation12 + $0x17c] sm:$0xf]
        %v1552 = vunpack.c.l.b16 %v1408
        %v1553 = vunpack.c.h.b16 %v1408
        %v1554 = vunpack.c.l.b16 %v1409
        %v1555 = vunpack.c.h.b16 %v1409
        %v1556 = vunpack.c.l.b16 %v1410
        %v1557 = vunpack.c.h.b16 %v1410
        %v1558 = vunpack.c.l.b16 %v1411
        %v1559 = vunpack.c.h.b16 %v1411
        %v1560 = vunpack.c.l.b16 %v1412
        %v1561 = vunpack.c.h.b16 %v1412
        %v1562 = vunpack.c.l.b16 %v1413
        %v1563 = vunpack.c.h.b16 %v1413
        %v1564 = vunpack.c.l.b16 %v1414
        %v1565 = vunpack.c.h.b16 %v1414
        %v1566 = vunpack.c.l.b16 %v1415
        %v1567 = vunpack.c.h.b16 %v1415
        %v1568 = vunpack.c.l.b16 %v1416
        %v1569 = vunpack.c.h.b16 %v1416
        %v1570 = vunpack.c.l.b16 %v1417
        %v1571 = vunpack.c.h.b16 %v1417
        %v1572 = vunpack.c.l.b16 %v1418
        %v1573 = vunpack.c.h.b16 %v1418
        %v1574 = vunpack.c.l.b16 %v1419
        %v1575 = vunpack.c.h.b16 %v1419
        %v1576 = vunpack.c.l.b16 %v1420
        %v1577 = vunpack.c.h.b16 %v1420
        %v1578 = vunpack.c.l.b16 %v1421
        %v1579 = vunpack.c.h.b16 %v1421
        %v1580 = vunpack.c.l.b16 %v1422
        %v1581 = vunpack.c.h.b16 %v1422
        %v1582 = vunpack.c.l.b16 %v1423
        %v1583 = vunpack.c.h.b16 %v1423
        %v1584 = vunpack.c.l.b16 %v1424
        %v1585 = vunpack.c.h.b16 %v1424
        %v1586 = vunpack.c.l.b16 %v1425
        %v1587 = vunpack.c.h.b16 %v1425
        %v1588 = vunpack.c.l.b16 %v1426
        %v1589 = vunpack.c.h.b16 %v1426
        %v1590 = vunpack.c.l.b16 %v1427
        %v1591 = vunpack.c.h.b16 %v1427
        %v1592 = vunpack.c.l.b16 %v1428
        %v1593 = vunpack.c.h.b16 %v1428
        %v1594 = vunpack.c.l.b16 %v1429
        %v1595 = vunpack.c.h.b16 %v1429
        %v1596 = vunpack.c.l.b16 %v1430
        %v1597 = vunpack.c.h.b16 %v1430
        %v1598 = vunpack.c.l.b16 %v1431
        %v1599 = vunpack.c.h.b16 %v1431
        %v1600 = vpack.c.b16 %v1558, %v1552
        %v1601 = vpack.c.b16 %v1559, %v1553
        %v1602 = vpack.c.b16 %v1560, %v1554
        %v1603 = vpack.c.b16 %v1561, %v1555
        %v1604 = vpack.c.b16 %v1562, %v1556
        %v1605 = vpack.c.b16 %v1563, %v1557
        %v1606 = vpack.c.b16 %v1570, %v1564
        %v1607 = vpack.c.b16 %v1571, %v1565
        %v1608 = vpack.c.b16 %v1572, %v1566
        %v1609 = vpack.c.b16 %v1573, %v1567
        %v1610 = vpack.c.b16 %v1574, %v1568
        %v1611 = vpack.c.b16 %v1575, %v1569
        %v1612 = vpack.c.b16 %v1582, %v1576
        %v1613 = vpack.c.b16 %v1583, %v1577
        %v1614 = vpack.c.b16 %v1584, %v1578
        %v1615 = vpack.c.b16 %v1585, %v1579
        %v1616 = vpack.c.b16 %v1586, %v1580
        %v1617 = vpack.c.b16 %v1587, %v1581
        %v1618 = vpack.c.b16 %v1594, %v1588
        %v1619 = vpack.c.b16 %v1595, %v1589
        %v1620 = vpack.c.b16 %v1596, %v1590
        %v1621 = vpack.c.b16 %v1597, %v1591
        %v1622 = vpack.c.b16 %v1598, %v1592
        %v1623 = vpack.c.b16 %v1599, %v1593
        %v1744 = vunpack.c.l.b16 %v1432
        %v1745 = vunpack.c.l.b16 %v1433
        %v1746 = vunpack.c.l.b16 %v1434
        %v1747 = vunpack.c.l.b16 %v1435
        %v1748 = vunpack.c.l.b16 %v1436
        %v1749 = vunpack.c.l.b16 %v1437
        %v1750 = vunpack.c.l.b16 %v1438
        %v1751 = vunpack.c.l.b16 %v1439
        %v1752 = vunpack.c.l.b16 %v1440
        %v1753 = vunpack.c.l.b16 %v1441
        %v1754 = vunpack.c.l.b16 %v1442
        %v1755 = vunpack.c.l.b16 %v1443
        %v1756 = vunpack.c.l.b16 %v1444
        %v1757 = vunpack.c.l.b16 %v1445
        %v1758 = vunpack.c.l.b16 %v1446
        %v1759 = vunpack.c.l.b16 %v1447
        %v1760 = vunpack.c.l.b16 %v1448
        %v1761 = vunpack.c.l.b16 %v1449
        %v1762 = vunpack.c.l.b16 %v1450
        %v1763 = vunpack.c.l.b16 %v1451
        %v1764 = vunpack.c.l.b16 %v1452
        %v1765 = vunpack.c.l.b16 %v1453
        %v1766 = vunpack.c.l.b16 %v1454
        %v1767 = vunpack.c.l.b16 %v1455
        %v1768 = vunpack.c.l.b16 %v1456
        %v1769 = vunpack.c.l.b16 %v1457
        %v1770 = vunpack.c.l.b16 %v1458
        %v1771 = vunpack.c.l.b16 %v1459
        %v1772 = vunpack.c.l.b16 %v1460
        %v1773 = vunpack.c.l.b16 %v1461
        %v1774 = vunpack.c.l.b16 %v1462
        %v1775 = vunpack.c.l.b16 %v1463
        %v1776 = vunpack.c.l.b16 %v1464
        %v1777 = vunpack.c.l.b16 %v1465
        %v1778 = vunpack.c.l.b16 %v1466
        %v1779 = vunpack.c.l.b16 %v1467
        %v1780 = vunpack.c.l.b16 %v1468
        %v1781 = vunpack.c.l.b16 %v1469
        %v1782 = vunpack.c.l.b16 %v1470
        %v1783 = vunpack.c.l.b16 %v1471
        %v1784 = vunpack.c.l.b16 %v1472
        %v1785 = vunpack.c.l.b16 %v1473
        %v1786 = vunpack.c.l.b16 %v1474
        %v1787 = vunpack.c.l.b16 %v1475
        %v1788 = vunpack.c.l.b16 %v1476
        %v1789 = vunpack.c.l.b16 %v1477
        %v1790 = vunpack.c.l.b16 %v1478
        %v1791 = vunpack.c.l.b16 %v1479
        %v1792 = vunpack.c.l.b16 %v1480
        %v1793 = vunpack.c.l.b16 %v1481
        %v1794 = vunpack.c.l.b16 %v1482
        %v1795 = vunpack.c.l.b16 %v1483
        %v1796 = vunpack.c.l.b16 %v1484
        %v1797 = vunpack.c.l.b16 %v1485
        %v1798 = vunpack.c.l.b16 %v1486
        %v1799 = vunpack.c.l.b16 %v1487
        %v1800 = vunpack.c.l.b16 %v1488
        %v1801 = vunpack.c.l.b16 %v1489
        %v1802 = vunpack.c.l.b16 %v1490
        %v1803 = vunpack.c.l.b16 %v1491
        %v1804 = vunpack.c.l.b16 %v1492
        %v1805 = vunpack.c.l.b16 %v1493
        %v1806 = vunpack.c.l.b16 %v1494
        %v1807 = vunpack.c.l.b16 %v1495
        %v1808 = vunpack.c.l.b16 %v1496
        %v1809 = vunpack.c.l.b16 %v1497
        %v1810 = vunpack.c.l.b16 %v1498
        %v1811 = vunpack.c.l.b16 %v1499
        %v1812 = vunpack.c.l.b16 %v1500
        %v1813 = vunpack.c.l.b16 %v1501
        %v1814 = vunpack.c.l.b16 %v1502
        %v1815 = vunpack.c.l.b16 %v1503
        %v1816 = vunpack.c.l.b16 %v1504
        %v1817 = vunpack.c.l.b16 %v1505
        %v1818 = vunpack.c.l.b16 %v1506
        %v1819 = vunpack.c.l.b16 %v1507
        %v1820 = vunpack.c.l.b16 %v1508
        %v1821 = vunpack.c.l.b16 %v1509
        %v1822 = vunpack.c.l.b16 %v1510
        %v1823 = vunpack.c.l.b16 %v1511
        %v1824 = vunpack.c.l.b16 %v1512
        %v1825 = vunpack.c.l.b16 %v1513
        %v1826 = vunpack.c.l.b16 %v1514
        %v1827 = vunpack.c.l.b16 %v1515
        %v1828 = vunpack.c.l.b16 %v1516
        %v1829 = vunpack.c.l.b16 %v1517
        %v1830 = vunpack.c.l.b16 %v1518
        %v1831 = vunpack.c.l.b16 %v1519
        %v1832 = vunpack.c.l.b16 %v1520
        %v1833 = vunpack.c.l.b16 %v1521
        %v1834 = vunpack.c.l.b16 %v1522
        %v1835 = vunpack.c.l.b16 %v1523
        %v1836 = vunpack.c.l.b16 %v1524
        %v1837 = vunpack.c.l.b16 %v1525
        %v1838 = vunpack.c.l.b16 %v1526
        %v1839 = vunpack.c.l.b16 %v1527
        %v1840 = vpack.c.b16 %v1745, %v1744
        %v1841 = vpack.c.b16 %v1747, %v1746
        %v1842 = vpack.c.b16 %v1749, %v1748
        %v1843 = vpack.c.b16 %v1751, %v1750
        %v1844 = vpack.c.b16 %v1753, %v1752
        %v1845 = vpack.c.b16 %v1755, %v1754
        %v1846 = vpack.c.b16 %v1757, %v1756
        %v1847 = vpack.c.b16 %v1759, %v1758
        %v1848 = vpack.c.b16 %v1761, %v1760
        %v1849 = vpack.c.b16 %v1763, %v1762
        %v1850 = vpack.c.b16 %v1765, %v1764
        %v1851 = vpack.c.b16 %v1767, %v1766
        %v1852 = vpack.c.b16 %v1769, %v1768
        %v1853 = vpack.c.b16 %v1771, %v1770
        %v1854 = vpack.c.b16 %v1773, %v1772
        %v1855 = vpack.c.b16 %v1775, %v1774
        %v1856 = vpack.c.b16 %v1777, %v1776
        %v1857 = vpack.c.b16 %v1779, %v1778
        %v1858 = vpack.c.b16 %v1781, %v1780
        %v1859 = vpack.c.b16 %v1783, %v1782
        %v1860 = vpack.c.b16 %v1785, %v1784
        %v1861 = vpack.c.b16 %v1787, %v1786
        %v1862 = vpack.c.b16 %v1789, %v1788
        %v1863 = vpack.c.b16 %v1791, %v1790
        %v1864 = vpack.c.b16 %v1793, %v1792
        %v1865 = vpack.c.b16 %v1795, %v1794
        %v1866 = vpack.c.b16 %v1797, %v1796
        %v1867 = vpack.c.b16 %v1799, %v1798
        %v1868 = vpack.c.b16 %v1801, %v1800
        %v1869 = vpack.c.b16 %v1803, %v1802
        %v1870 = vpack.c.b16 %v1805, %v1804
        %v1871 = vpack.c.b16 %v1807, %v1806
        %v1872 = vpack.c.b16 %v1809, %v1808
        %v1873 = vpack.c.b16 %v1811, %v1810
        %v1874 = vpack.c.b16 %v1813, %v1812
        %v1875 = vpack.c.b16 %v1815, %v1814
        %v1876 = vpack.c.b16 %v1817, %v1816
        %v1877 = vpack.c.b16 %v1819, %v1818
        %v1878 = vpack.c.b16 %v1821, %v1820
        %v1879 = vpack.c.b16 %v1823, %v1822
        %v1880 = vpack.c.b16 %v1825, %v1824
        %v1881 = vpack.c.b16 %v1827, %v1826
        %v1882 = vpack.c.b16 %v1829, %v1828
        %v1883 = vpack.c.b16 %v1831, %v1830
        %v1884 = vpack.c.b16 %v1833, %v1832
        %v1885 = vpack.c.b16 %v1835, %v1834
        %v1886 = vpack.c.b16 %v1837, %v1836
        %v1887 = vpack.c.b16 %v1839, %v1838
        %1936 = vmatpush.bf16.msra.mxu0 %v1847
        %1937 = vmatpush.bf16.msra.mxu0 %v1846
        %1938 = vmatpush.bf16.msra.mxu0 %v1845
        %1939 = vmatpush.bf16.msra.mxu0 %v1844
        %1940 = vmatpush.bf16.msra.mxu0 %v1843
        %1941 = vmatpush.bf16.msra.mxu0 %v1842
        %1942 = vmatpush.bf16.msra.mxu0 %v1841
        %1943 = vmatpush.bf16.msra.mxu0 %v1840
        %1944 = vmatmul.bf16.gmra.mxu0 %v1600
        %v1945 = vpop.f32.mrf.mxu0
        %v1946 = vadd.f32 0.0, %v1945
        %v1947 = vpop.f32.mrf.mxu0
        %v1948 = vadd.f32 0.0, %v1947
        %1949 = vmatmul.bf16.gmra.mxu0 %v1606
        %v1950 = vpop.f32.mrf.mxu0
        %v1951 = vadd.f32 0.0, %v1950
        %v1952 = vpop.f32.mrf.mxu0
        %v1953 = vadd.f32 0.0, %v1952
        %1954 = vmatmul.bf16.gmra.mxu0 %v1612
        %v1955 = vpop.f32.mrf.mxu0
        %v1956 = vadd.f32 0.0, %v1955
        %v1957 = vpop.f32.mrf.mxu0
        %v1958 = vadd.f32 0.0, %v1957
        %1959 = vmatmul.bf16.gmra.mxu0 %v1618
        %v1960 = vpop.f32.mrf.mxu0
        %v1961 = vadd.f32 0.0, %v1960
        %v1962 = vpop.f32.mrf.mxu0
        %v1963 = vadd.f32 0.0, %v1962
        %1964 = vdwg.mxu0
        %1965 = vmatpush.bf16.msra.mxu0 %v1855
        %1966 = vmatpush.bf16.msra.mxu0 %v1854
        %1967 = vmatpush.bf16.msra.mxu0 %v1853
        %1968 = vmatpush.bf16.msra.mxu0 %v1852
        %1969 = vmatpush.bf16.msra.mxu0 %v1851
        %1970 = vmatpush.bf16.msra.mxu0 %v1850
        %1971 = vmatpush.bf16.msra.mxu0 %v1849
        %1972 = vmatpush.bf16.msra.mxu0 %v1848
        %1973 = vmatmul.bf16.gmra.mxu0 %v1601
        %v1974 = vpop.f32.mrf.mxu0
        %v1975 = vadd.f32 %v1946, %v1974
        %v1976 = vpop.f32.mrf.mxu0
        %v1977 = vadd.f32 %v1948, %v1976
        %1978 = vmatmul.bf16.gmra.mxu0 %v1607
        %v1979 = vpop.f32.mrf.mxu0
        %v1980 = vadd.f32 %v1951, %v1979
        %v1981 = vpop.f32.mrf.mxu0
        %v1982 = vadd.f32 %v1953, %v1981
        %1983 = vmatmul.bf16.gmra.mxu0 %v1613
        %v1984 = vpop.f32.mrf.mxu0
        %v1985 = vadd.f32 %v1956, %v1984
        %v1986 = vpop.f32.mrf.mxu0
        %v1987 = vadd.f32 %v1958, %v1986
        %1988 = vmatmul.bf16.gmra.mxu0 %v1619
        %v1989 = vpop.f32.mrf.mxu0
        %v1990 = vadd.f32 %v1961, %v1989
        %v1991 = vpop.f32.mrf.mxu0
        %v1992 = vadd.f32 %v1963, %v1991
        %1993 = vdwg.mxu0
        %1994 = vmatpush.bf16.msra.mxu0 %v1863
        %1995 = vmatpush.bf16.msra.mxu0 %v1862
        %1996 = vmatpush.bf16.msra.mxu0 %v1861
        %1997 = vmatpush.bf16.msra.mxu0 %v1860
        %1998 = vmatpush.bf16.msra.mxu0 %v1859
        %1999 = vmatpush.bf16.msra.mxu0 %v1858
        %2000 = vmatpush.bf16.msra.mxu0 %v1857
        %2001 = vmatpush.bf16.msra.mxu0 %v1856
        %2002 = vmatmul.bf16.gmra.mxu0 %v1602
        %v2003 = vpop.f32.mrf.mxu0
        %v2004 = vadd.f32 %v1975, %v2003
        %v2005 = vpop.f32.mrf.mxu0
        %v2006 = vadd.f32 %v1977, %v2005
        %2007 = vmatmul.bf16.gmra.mxu0 %v1608
        %v2008 = vpop.f32.mrf.mxu0
        %v2009 = vadd.f32 %v1980, %v2008
        %v2010 = vpop.f32.mrf.mxu0
        %v2011 = vadd.f32 %v1982, %v2010
        %2012 = vmatmul.bf16.gmra.mxu0 %v1614
        %v2013 = vpop.f32.mrf.mxu0
        %v2014 = vadd.f32 %v1985, %v2013
        %v2015 = vpop.f32.mrf.mxu0
        %v2016 = vadd.f32 %v1987, %v2015
        %2017 = vmatmul.bf16.gmra.mxu0 %v1620
        %v2018 = vpop.f32.mrf.mxu0
        %v2019 = vadd.f32 %v1990, %v2018
        %v2020 = vpop.f32.mrf.mxu0
        %v2021 = vadd.f32 %v1992, %v2020
        %2022 = vdwg.mxu0
        %2023 = vmatpush.bf16.msra.mxu0 %v1871
        %2024 = vmatpush.bf16.msra.mxu0 %v1870
        %2025 = vmatpush.bf16.msra.mxu0 %v1869
        %2026 = vmatpush.bf16.msra.mxu0 %v1868
        %2027 = vmatpush.bf16.msra.mxu0 %v1867
        %2028 = vmatpush.bf16.msra.mxu0 %v1866
        %2029 = vmatpush.bf16.msra.mxu0 %v1865
        %2030 = vmatpush.bf16.msra.mxu0 %v1864
        %2031 = vmatmul.bf16.gmra.mxu0 %v1603
        %v2032 = vpop.f32.mrf.mxu0
        %v2033 = vadd.f32 %v2004, %v2032
        %v2034 = vpop.f32.mrf.mxu0
        %v2035 = vadd.f32 %v2006, %v2034
        %2036 = vmatmul.bf16.gmra.mxu0 %v1609
        %v2037 = vpop.f32.mrf.mxu0
        %v2038 = vadd.f32 %v2009, %v2037
        %v2039 = vpop.f32.mrf.mxu0
        %v2040 = vadd.f32 %v2011, %v2039
        %2041 = vmatmul.bf16.gmra.mxu0 %v1615
        %v2042 = vpop.f32.mrf.mxu0
        %v2043 = vadd.f32 %v2014, %v2042
        %v2044 = vpop.f32.mrf.mxu0
        %v2045 = vadd.f32 %v2016, %v2044
        %2046 = vmatmul.bf16.gmra.mxu0 %v1621
        %v2047 = vpop.f32.mrf.mxu0
        %v2048 = vadd.f32 %v2019, %v2047
        %v2049 = vpop.f32.mrf.mxu0
        %v2050 = vadd.f32 %v2021, %v2049
        %2051 = vdwg.mxu0
        %2052 = vmatpush.bf16.msra.mxu0 %v1879
        %2053 = vmatpush.bf16.msra.mxu0 %v1878
        %2054 = vmatpush.bf16.msra.mxu0 %v1877
        %2055 = vmatpush.bf16.msra.mxu0 %v1876
        %2056 = vmatpush.bf16.msra.mxu0 %v1875
        %2057 = vmatpush.bf16.msra.mxu0 %v1874
        %2058 = vmatpush.bf16.msra.mxu0 %v1873
        %2059 = vmatpush.bf16.msra.mxu0 %v1872
        %2060 = vmatmul.bf16.gmra.mxu0 %v1604
        %v2061 = vpop.f32.mrf.mxu0
        %v2062 = vadd.f32 %v2033, %v2061
        %v2063 = vpop.f32.mrf.mxu0
        %v2064 = vadd.f32 %v2035, %v2063
        %2065 = vmatmul.bf16.gmra.mxu0 %v1610
        %v2066 = vpop.f32.mrf.mxu0
        %v2067 = vadd.f32 %v2038, %v2066
        %v2068 = vpop.f32.mrf.mxu0
        %v2069 = vadd.f32 %v2040, %v2068
        %2070 = vmatmul.bf16.gmra.mxu0 %v1616
        %v2071 = vpop.f32.mrf.mxu0
        %v2072 = vadd.f32 %v2043, %v2071
        %v2073 = vpop.f32.mrf.mxu0
        %v2074 = vadd.f32 %v2045, %v2073
        %2075 = vmatmul.bf16.gmra.mxu0 %v1622
        %v2076 = vpop.f32.mrf.mxu0
        %v2077 = vadd.f32 %v2048, %v2076
        %v2078 = vpop.f32.mrf.mxu0
        %v2079 = vadd.f32 %v2050, %v2078
        %2080 = vdwg.mxu0
        %2081 = vmatpush.bf16.msra.mxu0 %v1887
        %2082 = vmatpush.bf16.msra.mxu0 %v1886
        %2083 = vmatpush.bf16.msra.mxu0 %v1885
        %2084 = vmatpush.bf16.msra.mxu0 %v1884
        %2085 = vmatpush.bf16.msra.mxu0 %v1883
        %2086 = vmatpush.bf16.msra.mxu0 %v1882
        %2087 = vmatpush.bf16.msra.mxu0 %v1881
        %2088 = vmatpush.bf16.msra.mxu0 %v1880
        %2089 = vmatmul.bf16.gmra.mxu0 %v1605
        %v2090 = vpop.f32.mrf.mxu0
        %v2091 = vadd.f32 %v2062, %v2090
        %v2092 = vpop.f32.mrf.mxu0
        %v2093 = vadd.f32 %v2064, %v2092
        %2094 = vmatmul.bf16.gmra.mxu0 %v1611
        %v2095 = vpop.f32.mrf.mxu0
        %v2096 = vadd.f32 %v2067, %v2095
        %v2097 = vpop.f32.mrf.mxu0
        %v2098 = vadd.f32 %v2069, %v2097
        %2099 = vmatmul.bf16.gmra.mxu0 %v1617
        %v2100 = vpop.f32.mrf.mxu0
        %v2101 = vadd.f32 %v2072, %v2100
        %v2102 = vpop.f32.mrf.mxu0
        %v2103 = vadd.f32 %v2074, %v2102
        %2104 = vmatmul.bf16.gmra.mxu0 %v1623
        %v2105 = vpop.f32.mrf.mxu0
        %v2106 = vadd.f32 %v2077, %v2105
        %v2107 = vpop.f32.mrf.mxu0
        %v2108 = vadd.f32 %v2079, %v2107
        %2109 = vdwg.mxu0
        %2110 = vst [vmem:[%s470] sm:$0xff] %v2091
        %2111 = vst [vmem:[%s470 + $0x8] sm:$0xff] %v2093
        %2112 = vst [vmem:[%s470 + $0x10] sm:$0xff] %v2096
        %2113 = vst [vmem:[%s470 + $0x18] sm:$0xff] %v2098
        %2114 = vst [vmem:[%s470 + $0x20] sm:$0xff] %v2101
        %2115 = vst [vmem:[%s470 + $0x28] sm:$0xff] %v2103
        %2116 = vst [vmem:[%s470 + $0x30] sm:$0xff] %v2106
        %2117 = vst [vmem:[%s470 + $0x38] sm:$0xff] %v2108
        %v2118 = vadd.f32 %v2091, %v2093
        %v2119 = vadd.f32 %v2118, %v2096
        %v2120 = vadd.f32 %v2119, %v2098
        %v2121 = vadd.f32 %v2120, %v2101
        %v2122 = vadd.f32 %v2121, %v2103
        %v2123 = vadd.f32 %v2122, %v2106
        %v2124 = vadd.f32 %v2123, %v2108
        %v2125 = vrot.slane %v2124, 4
        %v2126 = vadd.f32 %v2124, %v2125
        %v2127 = vrot.slane %v2126, 2
        %v2128 = vadd.f32 %v2126, %v2127
        %v2129 = vrot.slane %v2128, 1
        %v2130 = vadd.f32 %v2128, %v2129
        %v2131 = vmul.f32 %v2091, %v2091
        %v2132 = vmul.f32 %v2093, %v2093
        %v2133 = vmul.f32 %v2096, %v2096
        %v2134 = vmul.f32 %v2098, %v2098
        %v2135 = vmul.f32 %v2101, %v2101
        %v2136 = vmul.f32 %v2103, %v2103
        %v2137 = vmul.f32 %v2106, %v2106
        %v2138 = vmul.f32 %v2108, %v2108
        %v2139 = vadd.f32 %v2131, %v2132
        %v2140 = vadd.f32 %v2139, %v2133
        %v2141 = vadd.f32 %v2140, %v2134
        %v2142 = vadd.f32 %v2141, %v2135
        %v2143 = vadd.f32 %v2142, %v2136
        %v2144 = vadd.f32 %v2143, %v2137
        %v2145 = vadd.f32 %v2144, %v2138
        %v2146 = vrot.slane %v2145, 4
        %v2147 = vadd.f32 %v2145, %v2146
        %v2148 = vrot.slane %v2147, 2
        %v2149 = vadd.f32 %v2147, %v2148
        %v2150 = vrot.slane %v2149, 1
        %v2151 = vadd.f32 %v2149, %v2150
        %vm2152 = vcmask 1040384
        %v2153 = vsel %vm2152, %v2130, %v2151
        %2154 = vst [vmem:[%s477] sm:$0x3] %v2153
        %s2155 = sand.u32 %s192, 1
        %s2156 = scalar_lea.sflag [#allocation6], %s2155
        %s2157 = sand.u32 %s192, 1
        %s2158 = smul.addr %s2157, 64
        %s2159 = scalar_lea.vmem [#allocation13], %s2158
        %s2160 = sand.u32 %s218, 1
        %s2161 = scalar_lea.sflag [#allocation15], %s2160
        %s2162 = sand.u32 %s218, 1
        %s2163 = smul.addr %s2162, 2
        %s2164 = scalar_lea.vmem [#allocation14], %s2163
        // Predicated region
        $region77: #{tpu_custom_call.1} parent=43 // pred_check
          %p2165 = pneg %p202
        $region78: #{tpu_custom_call.1} parent=43 // pred_check_branch
          %2167 = sbr.rel (%p2165) target = $region80
        $region79: #{tpu_custom_call.1} parent=43 // pred_region
          #allocation19 [shape = 'u32[6]{0}', space=smem, size = 0x18, scoped, tag = 'DMA stride descriptor']
          %s2168 = smul.u32 4, %s27
          %2170 = vsyncadd %s2156, 0
          %s2171 = smul.addr %s2168, 8
          %s2172 = scalar_lea.hbm %s6, %s2171
          %s2174 = sshll.u32 1, 14
          %s2175 = sxor.u32 4294967295, %s2174
          %s2178 = sshll.u32 7, 18
          %s2179 = sxor.u32 4294967295, %s2178
          %s2180 = sand.u32 0, %s2179
          %s2182 = sor.u32 %s2180, 0
          %s2183 = sshll.u32 %s2159, 4
          %s2184 = int_to_ptr.vmem [resolvable:$true] %s2183
          %s2185 = sshll.u32 %s2172, 4
          %s2186 = int_to_ptr.hbm [resolvable:$true] %s2185
          %2192 = sst [smem:[#allocation19]] 512
          %s2193 = scalar_lea.smem [#allocation19], 1
          %2194 = sst [smem:[%s2193]] 2048
          %s2195 = scalar_lea.smem [#allocation19], 2
          %2196 = sst [smem:[%s2195]] 4
          %s2197 = scalar_lea.smem [#allocation19], 3
          %2198 = sst [smem:[%s2197]] 128
          %s2199 = scalar_lea.smem [#allocation19], 4
          %2200 = sst [smem:[%s2199]] 128
          %s2201 = scalar_lea.smem [#allocation19], 5
          %2202 = sst [smem:[%s2201]] 8
          %2204 = dma.general %s2184, 1024, %s2186, %s2156, [#allocation18], [#allocation19], %s2182, 0
        $region80: #{tpu_custom_call.1} parent=43 // pred_fallthru
          _
        // Predicated region
        $region81: #{tpu_custom_call.1} parent=43 // pred_check
          %p2205 = pneg %p228
        $region82: #{tpu_custom_call.1} parent=43 // pred_check_branch
          %2207 = sbr.rel (%p2205) target = $region84
        $region83: #{tpu_custom_call.1} parent=43 // pred_region
          %2209 = vsyncadd %s2161, 0
          %s2210 = smul.addr %s27, 2
          %s2211 = scalar_lea.hbm %s7, %s2210
          %s2213 = sshll.u32 %s2164, 4
          %s2214 = int_to_ptr.vmem [resolvable:$true] %s2213
          %s2215 = sshll.u32 %s2211, 4
          %s2216 = int_to_ptr.hbm [resolvable:$true] %s2215
          %2218 = dma.vmem_to_hbm [thread:$0]  %s2214, 32, %s2216, %s2161
        $region84: #{tpu_custom_call.1} parent=43 // pred_fallthru
          _
      $region44: #{tpu_custom_call.1} parent=5 // pred_fallthru
        _
      %p2219 = scmp.le.s32.totalorder 2, %s22
      // Predicated region
      $region85: #{tpu_custom_call.1} parent=5 // pred_check
        %p2220 = pneg %p2219
      $region86: #{tpu_custom_call.1} parent=5 // pred_check_branch
        %2222 = sbr.rel (%p2220) target = $region88
      $region87: #{tpu_custom_call.1} parent=5 // pred_region
        %s2223 = ssub.s32 %s22, 2
        // Predicated region
        $region89: #{tpu_custom_call.1} parent=87 // pred_check
          %p2224 = pneg %p208
        $region90: #{tpu_custom_call.1} parent=87 // pred_check_branch
          %2226 = sbr.rel (%p2224) target = $region92
        $region91: #{tpu_custom_call.1} parent=87 // pred_region
          %s2227 = sand.u32 %s193, 1
          %s2228 = scalar_lea.sflag [#allocation6], %s2227
          %s2229 = sand.u32 %s193, 1
          %s2230 = smul.addr %s2229, 64
          %s2231 = scalar_lea.vmem [#allocation13], %s2230
          %2233 = dma.done %s2228, 1024
        $region92: #{tpu_custom_call.1} parent=87 // pred_fallthru
          _
        // Predicated region
        $region93: #{tpu_custom_call.1} parent=87 // pred_check
          %p2234 = pneg %p234
        $region94: #{tpu_custom_call.1} parent=87 // pred_check_branch
          %2236 = sbr.rel (%p2234) target = $region96
        $region95: #{tpu_custom_call.1} parent=87 // pred_region
          %s2237 = sand.u32 %s219, 1
          %s2238 = scalar_lea.sflag [#allocation15], %s2237
          %s2239 = sand.u32 %s219, 1
          %s2240 = smul.addr %s2239, 2
          %s2241 = scalar_lea.vmem [#allocation14], %s2240
          %2243 = dma.done %s2238, 32
        $region96: #{tpu_custom_call.1} parent=87 // pred_fallthru
          _
      $region88: #{tpu_custom_call.1} parent=5 // pred_fallthru
        _
    $region6: #{tpu_custom_call.1} parent=1 // loop_footer
      %s26 = sadd.s32 1, %s22
    $region7: #{tpu_custom_call.1} parent=1 // loop_footer_branch
      %21 = sbr.rel target = $region3
    $region8: #{tpu_custom_call.1} parent=1 // loop_exit
      _
    %2244 = vsyncpa [#allocation5], 1
    %s2245 = scalar_lea.sflag [#allocation5], 1
    %2246 = vsyncpa %s2245, 1
    %2247 = vsyncpa [#allocation8], 1
    %2248 = vsyncpa [#allocation6], 1
    %s2249 = scalar_lea.sflag [#allocation6], 1
    %2250 = vsyncpa %s2249, 1
    %2251 = vsyncpa [#allocation15], 1
    %s2252 = scalar_lea.sflag [#allocation15], 1
    %2253 = vsyncpa %s2252, 1

</llo_original>
